<compile_context>
chip_gen: v7x
topology: tpu7x:2x2x1
jax: 0.10.0
libtpu: 0.0.40
codegen_flags: <defaults>
</compile_context>

<pallas_src>
import jax
import jax.numpy as jnp
from jax.experimental import pallas as pl
from jax.experimental.pallas import tpu as pltpu


def _round_up(x, m):
    return ((x + m - 1) // m) * m


def _projection_kernel(x_ref, w_ref, b_ref, o_ref, acc_ref):
    """One (i, j, k) grid step of y = x @ W_t + b.

    x_ref:   (tm, tk)  activation tile (compute dtype, e.g. bf16)
    w_ref:   (tk, tn)  weight tile, already in (K, N) layout
    b_ref:   (1, tn)   bias tile (f32; consumed only in the k==last epilogue)
    o_ref:   (tm, tn)  output tile
    acc_ref: (tm, tn)  f32 VMEM accumulator, persists across the K axis
    """
    k = pl.program_id(2)

    @pl.when(k == 0)
    def _():
        acc_ref[...] = jnp.zeros_like(acc_ref)

    acc_ref[...] += jnp.dot(
        x_ref[...], w_ref[...], preferred_element_type=jnp.float32
    )

    @pl.when(k == pl.num_programs(2) - 1)
    def _():
        o_ref[...] = (acc_ref[...] + b_ref[...].astype(jnp.float32)).astype(o_ref.dtype)


def encoder_base_forward(
    x,
    weight,
    bias,
    *,
    compute_dtype=jnp.bfloat16,
    tm_max=512,
    tn_max=512,
    tk_max=1024,
    force_pallas=False,
):
    """Pallas equivalent of EncoderBase.forward.

    x:      (..., in_dim)      "embeddings" (encode() is abstract -> identity)
    weight: (out_dim, in_dim)  torch nn.Linear layout
    bias:   (out_dim,)
    returns (..., out_dim) in x.dtype; matmul runs in `compute_dtype` on the MXU
    with f32 accumulation.
    """
    # TODO(synk): EncoderBase.encode() / get_output_dim() are abstract
    # (NotImplementedError); identity is used so the concrete compute is the
    # nn.Linear projection only.
    embeddings = x

    lead_shape = embeddings.shape[:-1]
    in_dim = embeddings.shape[-1]
    out_dim, w_in = weight.shape
    assert w_in == in_dim, "weight must be (out_dim, in_dim)"
    out_dtype = x.dtype

    x2 = embeddings.reshape(-1, in_dim)
    m = x2.shape[0]

    # ---- small-problem fast path: pipeline/pad overhead would dominate ----
    if not force_pallas and 2 * m * out_dim * in_dim < (1 << 24):
        y = jnp.dot(
            x2.astype(compute_dtype),
            weight.astype(compute_dtype).T,
            preferred_element_type=jnp.float32,
        )
        y = (y + bias.astype(jnp.float32)).astype(out_dtype)
        return y.reshape(*lead_shape, out_dim)

    # ---- generation-aware VMEM budget ----
    try:
        vmem_cap = int(pltpu.get_tpu_info().vmem_capacity_bytes)
    except Exception:  # info unavailable -> conservative (v7x-safe) default
        vmem_cap = 64 << 20
    vmem_limit = int(min(max(vmem_cap - (16 << 20), 32 << 20), 96 << 20))
    if vmem_cap >= (100 << 20):
        # v5e / v6e (128 MiB VMEM): allow wider N tiles -> weight re-fetched
        # far less often (or only a few N blocks total).
        tn_max = max(tn_max, 1024)

    # ---- tile sizes ----
    # Sublane packing is dtype-aware: bf16 packs 16 rows per vreg sublane group.
    itemsize = min(jnp.dtype(compute_dtype).itemsize, jnp.dtype(out_dtype).itemsize)
    sub = {4: 8, 2: 16, 1: 32}.get(itemsize, 16)

    n_pad = _round_up(out_dim, 128)   # lane-dense weight/bias/output columns

    # tm: sublane-aligned; snap to the 256-wide MXU grid once m is large.
    tm = min(tm_max, _round_up(m, sub))
    if tm >= 256:
        tm = (tm // 256) * 256
    # tn: lane-aligned; snap to 256 when wide (MXU-friendly, unmasked stores).
    tn = min(tn_max, n_pad)
    if tn >= 256:
        tn = (tn // 256) * 256
    # tk: one full-K step when it fits the cap (no K padding needed, the block
    # equals the full array dim); otherwise an MXU/lane-aligned strip.
    if _round_up(in_dim, 128) <= tk_max:
        tk = in_dim
        k_pad = in_dim
    else:
        tk = tk_max
        k_pad = _round_up(in_dim, tk)

    # v7x megacore: keep at least one "parallel" axis with extent >= 2 when the
    # whole problem would otherwise be a single output tile.
    if pl.cdiv(m, tm) == 1 and pl.cdiv(n_pad, tn) == 1 and m >= 256:
        tm = _round_up(pl.cdiv(m, 2), sub)

    # ---- operand preparation (cast before any pad so pads are half-width) ----
    xc = x2 if x2.dtype == compute_dtype else x2.astype(compute_dtype)
    wc = weight if weight.dtype == compute_dtype else weight.astype(compute_dtype)
    # One-time transpose to (K, N): kernel contracts (tm, tk) x (tk, tn)
    # canonically, so no per-step XLU transpose of the weight tile.
    wt = wc.T

    # Only K padding is required for correctness of the reduction; ragged M / N
    # edge blocks only produce rows/cols whose stores fall out of bounds.
    if k_pad != in_dim:
        xc = jnp.pad(xc, ((0, 0), (0, k_pad - in_dim)))
        wt = jnp.pad(wt, ((0, k_pad - in_dim), (0, 0)))
    if n_pad != out_dim:
        wt = jnp.pad(wt, ((0, 0), (0, n_pad - out_dim)))
        b2 = jnp.pad(bias, (0, n_pad - out_dim))
    else:
        b2 = bias
    b2 = b2.reshape(1, n_pad).astype(jnp.float32)

    gi = pl.cdiv(m, tm)
    gj = pl.cdiv(n_pad, tn)
    gk = k_pad // tk
    grid = (gi, gj, gk)

    # Advisory cost: account for operand re-fetch across the grid.
    cost = pl.CostEstimate(
        flops=2 * m * n_pad * k_pad,
        transcendentals=0,
        bytes_accessed=int(
            xc.size * xc.dtype.itemsize * gj
            + wt.size * wt.dtype.itemsize * gi
            + b2.size * b2.dtype.itemsize * gi
            + m * n_pad * jnp.dtype(out_dtype).itemsize
        ),
    )

    out = pl.pallas_call(
        _projection_kernel,
        out_shape=jax.ShapeDtypeStruct((m, n_pad), out_dtype),
        grid_spec=pltpu.PrefetchScalarGridSpec(
            num_scalar_prefetch=0,
            grid=grid,
            in_specs=[
                pl.BlockSpec((tm, tk), lambda i, j, k: (i, k)),   # activations
                pl.BlockSpec((tk, tn), lambda i, j, k: (k, j)),   # weight (K, N)
                pl.BlockSpec((1, tn), lambda i, j, k: (0, j)),    # bias
            ],
            out_specs=pl.BlockSpec((tm, tn), lambda i, j, k: (i, j)),
            scratch_shapes=[pltpu.VMEM((tm, tn), jnp.float32)],
        ),
        compiler_params=pltpu.CompilerParams(
            # M/N independent (shardable across v7x's two TensorCores); K is the
            # reduction axis and must stay "arbitrary".
            dimension_semantics=("parallel", "parallel", "arbitrary"),
            vmem_limit_bytes=vmem_limit,
        ),
        cost_estimate=cost,
    )(xc, wt, b2)

    if n_pad != out_dim:
        out = out[:, :out_dim]
    return out.reshape(*lead_shape, out_dim)


if __name__ == "__main__":
    key = jax.random.PRNGKey(0)
    k1, k2, k3, k4, k5, k6 = jax.random.split(key, 6)

    # --- Case 1: tiny, module-consistent shapes (hits the XLA fast path) ---
    batch, in_dim, out_dim = 8, 32, 16
    x_s = jax.random.normal(k1, (batch, in_dim), dtype=jnp.float32)
    bound = 1.0 / jnp.sqrt(in_dim)
    w_s = jax.random.uniform(k2, (out_dim, in_dim), minval=-bound, maxval=bound,
                             dtype=jnp.float32)
    b_s = jax.random.uniform(k3, (out_dim,), minval=-bound, maxval=bound,
                             dtype=jnp.float32)
    y_s = jax.block_until_ready(encoder_base_forward(x_s, w_s, b_s))
    ref_s = jnp.dot(x_s.astype(jnp.bfloat16), w_s.astype(jnp.bfloat16).T,
                    preferred_element_type=jnp.float32) + b_s
    assert y_s.shape == (batch, out_dim)
    assert jnp.allclose(y_s, ref_s, atol=1e-2, rtol=1e-2)

    # --- Case 2: shapes that exercise the Pallas kernel (multi-block grid,
    #     ragged M edge, zero wrapper padding) ---
    B, S, D, O = 4, 88, 384, 256          # m = 352, K = 384, N = 256
    x = jax.random.normal(k4, (B, S, D), dtype=jnp.float32)
    bound = 1.0 / jnp.sqrt(D)
    w = jax.random.uniform(k5, (O, D), minval=-bound, maxval=bound,
                           dtype=jnp.float32)
    b = jax.random.uniform(k6, (O,), minval=-bound, maxval=bound,
                           dtype=jnp.float32)

    y = jax.block_until_ready(encoder_base_forward(x, w, b, force_pallas=True))
    assert y.shape == (B, S, O)

    # Reference at matching (bf16 MXU, f32 acc) precision:
    ref = (jnp.dot(x.reshape(-1, D).astype(jnp.bfloat16),
                   w.astype(jnp.bfloat16).T,
                   preferred_element_type=jnp.float32) + b).reshape(B, S, O)
    assert jnp.allclose(y, ref, atol=1e-2, rtol=1e-2)
    # And against the full-f32 reference with bf16-level tolerance:
    ref_f32 = x @ w.T + b
    assert jnp.allclose(y, ref_f32, atol=5e-2, rtol=5e-2)

    print("KERNEL_OK")
</pallas_src>

<mosaic_0001>
module attributes {stable_mosaic.version = 11 : i64} {
  func.func @_projection_kernel(%arg0: i32, %arg1: i32, %arg2: i32, %arg3: memref<256x384xbf16, #tpu.memory_space<vmem>>, %arg4: memref<384x256xbf16, #tpu.memory_space<vmem>>, %arg5: memref<1x256xf32, #tpu.memory_space<vmem>>, %arg6: memref<256x256xf32, #tpu.memory_space<vmem>>, %arg7: memref<256x256xf32, #tpu.memory_space<vmem>>) attributes {dimension_semantics = [#tpu.dimension_semantics<parallel>, #tpu.dimension_semantics<parallel>, #tpu.dimension_semantics<arbitrary>], iteration_bounds = array<i64: 2, 1, 1>, scalar_prefetch = 0 : i64, scratch_operands = 1 : i64, tpu.core_type = #tpu.core_type<tc>, window_params = [{transform_indices = @transform_0, window_bounds = array<i64: 256, 384>}, {transform_indices = @transform_1, window_bounds = array<i64: 384, 256>}, {transform_indices = @transform_2, window_bounds = array<i64: 1, 256>}, {transform_indices = @transform_3, window_bounds = array<i64: 256, 256>}]} {
    %c0_i32 = arith.constant 0 : i32
    %0 = arith.cmpi eq, %arg2, %c0_i32 : i32
    %1 = arith.extui %0 : i1 to i32
    %c0_i32_0 = arith.constant 0 : i32
    %2 = arith.cmpi ne, %1, %c0_i32_0 : i32
    scf.if %2 {
      %cst_10 = arith.constant 0.000000e+00 : f32
      %12 = vector.broadcast %cst_10 : f32 to vector<256x256xf32>
      %c0_11 = arith.constant 0 : index
      %c0_12 = arith.constant 0 : index
      %13 = vector.load %arg7[%c0_11, %c0_12] : memref<256x256xf32, #tpu.memory_space<vmem>>, vector<256x256xf32>
      tpu.vector_store %arg7[%c0_11, %c0_12], %12 {strides = array<i32>} : memref<256x256xf32, #tpu.memory_space<vmem>>, vector<256x256xf32>,
    } else {
    }
    %c0 = arith.constant 0 : index
    %c0_1 = arith.constant 0 : index
    %3 = vector.load %arg7[%c0, %c0_1] : memref<256x256xf32, #tpu.memory_space<vmem>>, vector<256x256xf32>
    %c0_2 = arith.constant 0 : index
    %c0_3 = arith.constant 0 : index
    %4 = vector.load %arg3[%c0_2, %c0_3] : memref<256x384xbf16, #tpu.memory_space<vmem>>, vector<256x384xbf16>
    %c0_4 = arith.constant 0 : index
    %c0_5 = arith.constant 0 : index
    %5 = vector.load %arg4[%c0_4, %c0_5] : memref<384x256xbf16, #tpu.memory_space<vmem>>, vector<384x256xbf16>
    %cst = arith.constant dense<0.000000e+00> : vector<256x256xf32>
    %6 = tpu.matmul %4, %5, %cst {dimension_numbers = #tpu.dot_dimension_numbers<[1], [0], [0], [1], [0, 0, 1, 1], [], []>} : vector<256x384xbf16>, vector<384x256xbf16>, vector<256x256xf32> -> vector<256x256xf32>
    %7 = arith.addf %3, %6 : vector<256x256xf32>
    %c0_6 = arith.constant 0 : index
    %c0_7 = arith.constant 0 : index
    %8 = vector.load %arg7[%c0_6, %c0_7] : memref<256x256xf32, #tpu.memory_space<vmem>>, vector<256x256xf32>
    tpu.vector_store %arg7[%c0_6, %c0_7], %7 {strides = array<i32>} : memref<256x256xf32, #tpu.memory_space<vmem>>, vector<256x256xf32>,
    %c0_i32_8 = arith.constant 0 : i32
    %9 = arith.cmpi eq, %arg2, %c0_i32_8 : i32
    %10 = arith.extui %9 : i1 to i32
    %c0_i32_9 = arith.constant 0 : i32
    %11 = arith.cmpi ne, %10, %c0_i32_9 : i32
    scf.if %11 {
      %c0_10 = arith.constant 0 : index
      %c0_11 = arith.constant 0 : index
      %12 = vector.load %arg7[%c0_10, %c0_11] : memref<256x256xf32, #tpu.memory_space<vmem>>, vector<256x256xf32>
      %c0_12 = arith.constant 0 : index
      %c0_13 = arith.constant 0 : index
      %13 = vector.load %arg5[%c0_12, %c0_13] : memref<1x256xf32, #tpu.memory_space<vmem>>, vector<1x256xf32>
      %14 = vector.broadcast %13 : vector<1x256xf32> to vector<256x256xf32>
      %15 = arith.addf %12, %14 : vector<256x256xf32>
      %c0_14 = arith.constant 0 : index
      %c0_15 = arith.constant 0 : index
      %16 = vector.load %arg6[%c0_14, %c0_15] : memref<256x256xf32, #tpu.memory_space<vmem>>, vector<256x256xf32>
      tpu.vector_store %arg6[%c0_14, %c0_15], %15 {strides = array<i32>} : memref<256x256xf32, #tpu.memory_space<vmem>>, vector<256x256xf32>,
    } else {
    }
    return
  }
  func.func @transform_0(%arg0: i32, %arg1: i32, %arg2: i32) -> (i32, i32) {
    %c0_i32 = arith.constant 0 : i32
    return %arg0, %arg2 : i32, i32
  }
  func.func @transform_1(%arg0: i32, %arg1: i32, %arg2: i32) -> (i32, i32) {
    %c0_i32 = arith.constant 0 : i32
    return %arg2, %arg1 : i32, i32
  }
  func.func @transform_2(%arg0: i32, %arg1: i32, %arg2: i32) -> (i32, i32) {
    %c0_i32 = arith.constant 0 : i32
    %c0_i32_0 = arith.constant 0 : i32
    return %c0_i32, %arg1 : i32, i32
  }
  func.func @transform_3(%arg0: i32, %arg1: i32, %arg2: i32) -> (i32, i32) {
    %c0_i32 = arith.constant 0 : i32
    return %arg0, %arg1 : i32, i32
  }
}

</mosaic_0001>

<llo_original>
// kernel: tpu_custom_call.1
$region0: #{tpu_custom_call.1}
  #allocation0 [shape = 'u32[]', space=smem, size = 0x4, offset = 0x4, fixed_abs, tag = 'smem constant byte address 0x4 - core index']
  #allocation1 [shape = 'u32[144,128]{1,0:T(1,128)}', space=vmem, size = 0x12000, scoped, tag = 'internal scratch']
  #allocation2 [shape = 'f32[256,256]{1,0:T(8,128)}', space=vmem, size = 0x40000, scoped, tag = 'scratch operand']
  %s0 = inlined_call_operand.hbm [shape: bf16[352,384], index: 0, kind: input, shape index: {}]
  %s1 = inlined_call_operand.hbm [shape: bf16[384,256], index: 1, kind: input, shape index: {}]
  %s2 = inlined_call_operand.vmem [shape: f32[1,256], index: 2, kind: input, shape index: {}]
  %s3 = inlined_call_operand.hbm [shape: f32[352,256], index: 3, kind: output, shape index: {}]
  %s4 = sld [smem:[#allocation0]]
  $region61: #{tpu_custom_call.1} parent=0
    _
  %s6 = ssub.s32 1, %s4
  %s7 = scalar_select 0, %s6, %s4
  $region1: #{tpu_custom_call.1} parent=0
    #allocation3 [shape = 'u8[393216]{0}', space=vmem, size = 0x60000, scoped, tag = 'input window, operand 0']
    #allocation4 [shape = 's32[2]{0}', space=sflag, size = 0x8, scoped, tag = 'scoped memory for tpu_custom_call.1']
    #allocation5 [shape = 's32[2]{0}', space=sflag, size = 0x8, scoped, tag = 'scoped memory for tpu_custom_call.1']
    #allocation6 [shape = 'u8[196608]{0}', space=vmem, size = 0x30000, scoped, tag = 'input window, operand 1, single buffered']
    #allocation7 [shape = 's32[1]{0}', space=sflag, size = 0x4, scoped, tag = 'scoped memory for tpu_custom_call.1']
    #allocation8 [shape = 'u8[524288]{0}', space=vmem, size = 0x80000, scoped, tag = 'output window, operand 0']
    %8 = vsyncpa [#allocation4], 0
    %s9 = scalar_lea.sflag [#allocation4], 1
    %10 = vsyncpa %s9, 0
    %11 = vsyncpa [#allocation7], 0
    %12 = vsyncpa [#allocation5], 0
    %s13 = scalar_lea.sflag [#allocation5], 1
    %14 = vsyncpa %s13, 0
    loop: start=0, step=1, limit=4
    $region2: #{tpu_custom_call.1} parent=1 // loop_pre_header
      _
    $region3: #{tpu_custom_call.1} parent=1 // loop_header
      %s16 = sphi 0, %s20
      %p17 = scmp.ge.s32.totalorder %s16, 4
      %s23 = sphi 0, %s42
      %s24 = sphi 0, %s38
      %s25 = sphi 0, %s34
      %s26 = sphi 0, %s23
      %s27 = sphi 0, %s24
      %s28 = sphi 0, %s25
      %s29 = sphi 0, %s26
      %s30 = sphi 0, %s27
      %s31 = sphi 0, %s28
      %s47 = sphi 0, %s49
      %s50 = sphi 0, %s47
      %s51 = sphi 0, %s50
      %s67 = sphi 0, %s51
      %s75 = sphi 0, %s77
      %s78 = sphi 0, %s75
      %s79 = sphi 0, %s78
      %s95 = sphi 0, %s79
      %s101 = sphi 0, %s103
      %s104 = sphi 0, %s101
      %s105 = sphi 0, %s104
      %s121 = sphi 0, %s105
      %s129 = sphi 0, %s131
      %s132 = sphi 0, %s129
      %s133 = sphi 0, %s132
      %s149 = sphi 0, %s133
    $region4: #{tpu_custom_call.1} parent=1 // loop_header_branch
      %19 = sbr.rel (%p17) target = $region8
    $region5: #{tpu_custom_call.1} parent=1 // loop_body
      %s21 = ssub.s32 %s16, 1
      %s22 = ssub.s32 %s16, 2
      %s32 = sadd.s32 1, %s25
      %p33 = scmp.ge.s32.totalorder %s32, 1
      %s34 = scalar_select %p33, 0, %s32
      %s35 = sadd.s32 1, %s24
      %s36 = scalar_select %p33, %s35, %s24
      %p37 = scmp.ge.s32.totalorder %s36, 1
      %s38 = scalar_select %p37, 0, %s36
      %s39 = sadd.s32 1, %s23
      %s40 = scalar_select %p37, %s39, %s23
      %p41 = scmp.ge.s32.totalorder %s40, 2
      %s42 = scalar_select %p41, 0, %s40
      %s43 = ssub.s32 %s23, %s42
      %s44 = ssub.s32 %s25, %s34
      %s45 = sor.u32 %s43, %s44
      %p46 = scmp.eq.s32.totalorder %s45, 0
      %s48 = sadd.s32 %s47, 1
      %s49 = scalar_select %p46, %s47, %s48
      %p52 = pneg %p46
      %p53 = scmp.eq.s32.totalorder %s16, 1
      %p54 = por %p52, %p53
      %p55 = scmp.ne.s32.totalorder %s47, %s50
      %p56 = scmp.eq.s32.totalorder %s16, 0
      %p57 = por %p55, %p56
      %p58 = scmp.ne.s32.totalorder %s47, %s50
      %p59 = scmp.eq.s32.totalorder %s21, 1
      %p60 = por %p58, %p59
      %p61 = scmp.ne.s32.totalorder %s50, %s51
      %p62 = scmp.eq.s32.totalorder %s21, 0
      %p63 = por %p61, %p62
      %p64 = scmp.ne.s32.totalorder %s50, %s51
      %p65 = scmp.eq.s32.totalorder %s22, 1
      %p66 = por %p64, %p65
      %p68 = scmp.ne.s32.totalorder %s51, %s67
      %p69 = scmp.eq.s32.totalorder %s22, 0
      %p70 = por %p68, %p69
      %s71 = ssub.s32 %s25, %s34
      %s72 = ssub.s32 %s24, %s38
      %s73 = sor.u32 %s71, %s72
      %p74 = scmp.eq.s32.totalorder %s73, 0
      %s76 = sadd.s32 %s75, 1
      %s77 = scalar_select %p74, %s75, %s76
      %p80 = pneg %p74
      %p81 = scmp.eq.s32.totalorder %s16, 1
      %p82 = por %p80, %p81
      %p83 = scmp.ne.s32.totalorder %s75, %s78
      %p84 = scmp.eq.s32.totalorder %s16, 0
      %p85 = por %p83, %p84
      %p86 = scmp.ne.s32.totalorder %s75, %s78
      %p87 = scmp.eq.s32.totalorder %s21, 1
      %p88 = por %p86, %p87
      %p89 = scmp.ne.s32.totalorder %s78, %s79
      %p90 = scmp.eq.s32.totalorder %s21, 0
      %p91 = por %p89, %p90
      %p92 = scmp.ne.s32.totalorder %s78, %s79
      %p93 = scmp.eq.s32.totalorder %s22, 1
      %p94 = por %p92, %p93
      %p96 = scmp.ne.s32.totalorder %s79, %s95
      %p97 = scmp.eq.s32.totalorder %s22, 0
      %p98 = por %p96, %p97
      %s99 = ssub.s32 %s24, %s38
      %p100 = scmp.eq.s32.totalorder %s99, 0
      %s102 = sadd.s32 %s101, 1
      %s103 = scalar_select %p100, %s101, %s102
      %p106 = pneg %p100
      %p107 = scmp.eq.s32.totalorder %s16, 1
      %p108 = por %p106, %p107
      %p109 = scmp.ne.s32.totalorder %s101, %s104
      %p110 = scmp.eq.s32.totalorder %s16, 0
      %p111 = por %p109, %p110
      %p112 = scmp.ne.s32.totalorder %s101, %s104
      %p113 = scmp.eq.s32.totalorder %s21, 1
      %p114 = por %p112, %p113
      %p115 = scmp.ne.s32.totalorder %s104, %s105
      %p116 = scmp.eq.s32.totalorder %s21, 0
      %p117 = por %p115, %p116
      %p118 = scmp.ne.s32.totalorder %s104, %s105
      %p119 = scmp.eq.s32.totalorder %s22, 1
      %p120 = por %p118, %p119
      %p122 = scmp.ne.s32.totalorder %s105, %s121
      %p123 = scmp.eq.s32.totalorder %s22, 0
      %p124 = por %p122, %p123
      %s125 = ssub.s32 %s23, %s42
      %s126 = ssub.s32 %s24, %s38
      %s127 = sor.u32 %s125, %s126
      %p128 = scmp.eq.s32.totalorder %s127, 0
      %s130 = sadd.s32 %s129, 1
      %s131 = scalar_select %p128, %s129, %s130
      %p134 = pneg %p128
      %p135 = scmp.eq.s32.totalorder %s16, 1
      %p136 = por %p134, %p135
      %p137 = scmp.ne.s32.totalorder %s129, %s132
      %p138 = scmp.eq.s32.totalorder %s16, 0
      %p139 = por %p137, %p138
      %p140 = scmp.ne.s32.totalorder %s129, %s132
      %p141 = scmp.eq.s32.totalorder %s21, 1
      %p142 = por %p140, %p141
      %p143 = scmp.ne.s32.totalorder %s132, %s133
      %p144 = scmp.eq.s32.totalorder %s21, 0
      %p145 = por %p143, %p144
      %p146 = scmp.ne.s32.totalorder %s132, %s133
      %p147 = scmp.eq.s32.totalorder %s22, 1
      %p148 = por %p146, %p147
      %p150 = scmp.ne.s32.totalorder %s133, %s149
      %p151 = scmp.eq.s32.totalorder %s22, 0
      %p152 = por %p150, %p151
      %p153 = scmp.le.s32.totalorder 1, %s16
      %p154 = scmp.lt.s32.totalorder %s16, 3
      %p155 = pnand %p153, %p154
      %p156 = pneg %p155
      // Predicated region
      $region9: #{tpu_custom_call.1} parent=5 // pred_check
        _
      $region10: #{tpu_custom_call.1} parent=5 // pred_check_branch
        %158 = sbr.rel (%p155) target = $region12
      $region11: #{tpu_custom_call.1} parent=5 // pred_region
        %s159 = ssub.s32 %s16, 1
        // Predicated region
        $region13: #{tpu_custom_call.1} parent=11 // pred_check
          %p160 = pneg %p91
        $region14: #{tpu_custom_call.1} parent=11 // pred_check_branch
          %162 = sbr.rel (%p160) target = $region16
        $region15: #{tpu_custom_call.1} parent=11 // pred_region
          %s163 = smul.u32 48, %s28
          %s164 = smul.u32 2, %s27
          %s166 = ssub.s32 6144, 6144
          %167 = vsyncadd [#allocation7], %s166
          %s168 = smul.addr %s163, 2
          %s169 = sadd.s32 %s164, %s168
          %s170 = smul.addr %s169, 64
          %s171 = scalar_lea.hbm %s1, %s170
          %s172 = sshll.u32 [#allocation6], 4
          %s173 = int_to_ptr.vmem [resolvable:$true] %s172
          %178 = dma.hbm_to_vmem [thread:$0]  %s171, 6144, %s173, [#allocation7], 128, 128, 8
        $region16: #{tpu_custom_call.1} parent=11 // pred_fallthru
          _
        // Predicated region
        $region17: #{tpu_custom_call.1} parent=11 // pred_check
          %p179 = pneg %p117
        $region18: #{tpu_custom_call.1} parent=11 // pred_check_branch
          %181 = sbr.rel (%p179) target = $region20
        $region19: #{tpu_custom_call.1} parent=11 // pred_region
          %s182 = smul.u32 2, %s27
          %p183 = scmp.lt.s32.totalorder %s182, 1
          %s184 = scalar_select %p183, %s182, 1
          %s185 = scalar_lea.vmem %s2, %s184
          %s186 = smul.u32 2, %s27
        $region20: #{tpu_custom_call.1} parent=11 // pred_fallthru
          _
      $region12: #{tpu_custom_call.1} parent=5 // pred_fallthru
        _
      %p187 = scmp.lt.s32.totalorder %s16, 2
      // Predicated region
      $region21: #{tpu_custom_call.1} parent=5 // pred_check
        %p188 = pneg %p187
      $region22: #{tpu_custom_call.1} parent=5 // pred_check_branch
        %190 = sbr.rel (%p188) target = $region24
      $region23: #{tpu_custom_call.1} parent=5 // pred_region
        // Predicated region
        $region25: #{tpu_custom_call.1} parent=23 // pred_check
          %p191 = pneg %p57
        $region26: #{tpu_custom_call.1} parent=23 // pred_check_branch
          %193 = sbr.rel (%p191) target = $region28
        $region27: #{tpu_custom_call.1} parent=23 // pred_region
          %s194 = sand.u32 %s47, 1
          %s195 = scalar_lea.sflag [#allocation4], %s194
          %s196 = sand.u32 %s47, 1
          %s197 = smul.addr %s196, 384
          %s198 = scalar_lea.vmem [#allocation3], %s197
          %s199 = smul.u32 32, %s23
          %s200 = smul.u32 3, %s25
          %s201 = ssub.s32 44, %s199
          %p202 = scmp.lt.s32.totalorder %s201, 32
          %s203 = scalar_select %p202, %s201, 32
          %s204 = smul.u32 64, %s203
          %s205 = smul.u32 %s204, 3
          %s207 = ssub.s32 6144, %s205
          %208 = vsyncadd %s195, %s207
          %p209 = scmp.ne.s32.totalorder 0, %s205
          %s210 = smul.addr %s199, 3
          %s211 = sadd.s32 %s200, %s210
          %s212 = smul.addr %s211, 64
          %s213 = scalar_lea.hbm %s0, %s212
          %s214 = smul.u32 12, %s203
          %s215 = sshll.u32 %s198, 4
          %s216 = int_to_ptr.vmem [resolvable:$true] %s215
          %s217 = sshll.u32 %s214, 4
          %221 = dma.hbm_to_vmem [thread:$0]  (%p209), %s213, %s217, %s216, %s195, 192, 192, 12
        $region28: #{tpu_custom_call.1} parent=23 // pred_fallthru
          _
      $region24: #{tpu_custom_call.1} parent=5 // pred_fallthru
        _
      %p222 = scmp.le.s32.totalorder 1, %s16
      %p223 = scmp.lt.s32.totalorder %s16, 3
      %p224 = pnand %p222, %p223
      %p225 = pneg %p224
      // Predicated region
      $region29: #{tpu_custom_call.1} parent=5 // pred_check
        _
      $region30: #{tpu_custom_call.1} parent=5 // pred_check_branch
        %227 = sbr.rel (%p224) target = $region32
      $region31: #{tpu_custom_call.1} parent=5 // pred_region
        %s228 = ssub.s32 %s16, 1
        %s229 = sand.u32 %s50, 1
        %s230 = scalar_lea.sflag [#allocation4], %s229
        %s231 = sand.u32 %s50, 1
        %s232 = smul.addr %s231, 384
        %s233 = scalar_lea.vmem [#allocation3], %s232
        // Predicated region
        $region33: #{tpu_custom_call.1} parent=31 // pred_check
          %p234 = pneg %p63
        $region34: #{tpu_custom_call.1} parent=31 // pred_check_branch
          %236 = sbr.rel (%p234) target = $region36
        $region35: #{tpu_custom_call.1} parent=31 // pred_region
          %237 = dma.done %s230, 6144
        $region36: #{tpu_custom_call.1} parent=31 // pred_fallthru
          _
        // Predicated region
        $region37: #{tpu_custom_call.1} parent=31 // pred_check
          %p238 = pneg %p91
        $region38: #{tpu_custom_call.1} parent=31 // pred_check_branch
          %240 = sbr.rel (%p238) target = $region40
        $region39: #{tpu_custom_call.1} parent=31 // pred_region
          %241 = dma.done [#allocation7], 6144
        $region40: #{tpu_custom_call.1} parent=31 // pred_fallthru
          _
        %s242 = sand.u32 %s50, 1
        %s243 = scalar_lea.sflag [#allocation4], %s242
        %s244 = sand.u32 %s50, 1
        %s245 = smul.addr %s244, 384
        %s246 = scalar_lea.vmem [#allocation3], %s245
        %p247 = pneg %p63
        %p248 = pneg %p60
        %p249 = pneg %p91
        %p250 = pneg %p88
        %s251 = smul.u32 2, %s27
        %p252 = scmp.lt.s32.totalorder %s251, 1
        %s253 = scalar_select %p252, %s251, 1
        %s254 = scalar_lea.vmem %s2, %s253
        %p255 = pneg %p117
        %p256 = pneg %p114
        %p257 = pneg %p145
        %p258 = pneg %p142
        %s259 = sand.u32 %s132, 1
        %s260 = scalar_lea.sflag [#allocation5], %s259
        %s261 = sand.u32 %s132, 1
        %s262 = smul.addr %s261, 512
        %s263 = scalar_lea.vmem [#allocation8], %s262
        %s264 = smul.u32 32, %s26
        %s265 = smul.u32 3, %s28
        %s266 = ssub.s32 44, %s264
        %p267 = scmp.lt.s32.totalorder %s266, 32
        %s268 = scalar_select %p267, %s266, 32
        %s269 = smul.u32 64, %s268
        %s270 = smul.u32 %s269, 3
        %s271 = smul.u32 48, %s28
        %s272 = smul.u32 2, %s27
        %s273 = smul.u32 2, %s27
        %p274 = scmp.lt.s32.totalorder %s273, 1
        %s275 = scalar_select %p274, %s273, 1
        %s276 = scalar_lea.vmem %s2, %s275
        %s277 = smul.u32 2, %s27
        %s278 = smul.u32 32, %s26
        %s279 = smul.u32 2, %s27
        %s280 = ssub.s32 44, %s278
        %p281 = scmp.lt.s32.totalorder %s280, 32
        %s282 = scalar_select %p281, %s280, 32
        %s283 = smul.u32 128, %s282
        %s284 = smul.u32 %s283, 2
        %p286 = scmp.eq.s32.totalorder %s28, 0
        // Predicated region
        $region41: #{tpu_custom_call.1} parent=31 // pred_check
          %p287 = pneg %p286
        $region42: #{tpu_custom_call.1} parent=31 // pred_check_branch
          %289 = sbr.rel (%p287) target = $region44
        $region43: #{tpu_custom_call.1} parent=31 // pred_region
          %290 = vst [vmem:[#allocation2] sm:$0xff] 0.0
          %291 = vst [vmem:[#allocation2 + $0x8] sm:$0xff] 0.0
          %292 = vst [vmem:[#allocation2 + $0x10] sm:$0xff] 0.0
          %293 = vst [vmem:[#allocation2 + $0x18] sm:$0xff] 0.0
          %294 = vst [vmem:[#allocation2 + $0x20] sm:$0xff] 0.0
          %295 = vst [vmem:[#allocation2 + $0x28] sm:$0xff] 0.0
          %296 = vst [vmem:[#allocation2 + $0x30] sm:$0xff] 0.0
          %297 = vst [vmem:[#allocation2 + $0x38] sm:$0xff] 0.0
          %298 = vst [vmem:[#allocation2 + $0x40] sm:$0xff] 0.0
          %299 = vst [vmem:[#allocation2 + $0x48] sm:$0xff] 0.0
          %300 = vst [vmem:[#allocation2 + $0x50] sm:$0xff] 0.0
          %301 = vst [vmem:[#allocation2 + $0x58] sm:$0xff] 0.0
          %302 = vst [vmem:[#allocation2 + $0x60] sm:$0xff] 0.0
          %303 = vst [vmem:[#allocation2 + $0x68] sm:$0xff] 0.0
          %304 = vst [vmem:[#allocation2 + $0x70] sm:$0xff] 0.0
          %305 = vst [vmem:[#allocation2 + $0x78] sm:$0xff] 0.0
          %306 = vst [vmem:[#allocation2 + $0x80] sm:$0xff] 0.0
          %307 = vst [vmem:[#allocation2 + $0x88] sm:$0xff] 0.0
          %308 = vst [vmem:[#allocation2 + $0x90] sm:$0xff] 0.0
          %309 = vst [vmem:[#allocation2 + $0x98] sm:$0xff] 0.0
          %310 = vst [vmem:[#allocation2 + $0xa0] sm:$0xff] 0.0
          %311 = vst [vmem:[#allocation2 + $0xa8] sm:$0xff] 0.0
          %312 = vst [vmem:[#allocation2 + $0xb0] sm:$0xff] 0.0
          %313 = vst [vmem:[#allocation2 + $0xb8] sm:$0xff] 0.0
          %314 = vst [vmem:[#allocation2 + $0xc0] sm:$0xff] 0.0
          %315 = vst [vmem:[#allocation2 + $0xc8] sm:$0xff] 0.0
          %316 = vst [vmem:[#allocation2 + $0xd0] sm:$0xff] 0.0
          %317 = vst [vmem:[#allocation2 + $0xd8] sm:$0xff] 0.0
          %318 = vst [vmem:[#allocation2 + $0xe0] sm:$0xff] 0.0
          %319 = vst [vmem:[#allocation2 + $0xe8] sm:$0xff] 0.0
          %320 = vst [vmem:[#allocation2 + $0xf0] sm:$0xff] 0.0
          %321 = vst [vmem:[#allocation2 + $0xf8] sm:$0xff] 0.0
          %322 = vst [vmem:[#allocation2 + $0x100] sm:$0xff] 0.0
          %323 = vst [vmem:[#allocation2 + $0x108] sm:$0xff] 0.0
          %324 = vst [vmem:[#allocation2 + $0x110] sm:$0xff] 0.0
          %325 = vst [vmem:[#allocation2 + $0x118] sm:$0xff] 0.0
          %326 = vst [vmem:[#allocation2 + $0x120] sm:$0xff] 0.0
          %327 = vst [vmem:[#allocation2 + $0x128] sm:$0xff] 0.0
          %328 = vst [vmem:[#allocation2 + $0x130] sm:$0xff] 0.0
          %329 = vst [vmem:[#allocation2 + $0x138] sm:$0xff] 0.0
          %330 = vst [vmem:[#allocation2 + $0x140] sm:$0xff] 0.0
          %331 = vst [vmem:[#allocation2 + $0x148] sm:$0xff] 0.0
          %332 = vst [vmem:[#allocation2 + $0x150] sm:$0xff] 0.0
          %333 = vst [vmem:[#allocation2 + $0x158] sm:$0xff] 0.0
          %334 = vst [vmem:[#allocation2 + $0x160] sm:$0xff] 0.0
          %335 = vst [vmem:[#allocation2 + $0x168] sm:$0xff] 0.0
          %336 = vst [vmem:[#allocation2 + $0x170] sm:$0xff] 0.0
          %337 = vst [vmem:[#allocation2 + $0x178] sm:$0xff] 0.0
          %338 = vst [vmem:[#allocation2 + $0x180] sm:$0xff] 0.0
          %339 = vst [vmem:[#allocation2 + $0x188] sm:$0xff] 0.0
          %340 = vst [vmem:[#allocation2 + $0x190] sm:$0xff] 0.0
          %341 = vst [vmem:[#allocation2 + $0x198] sm:$0xff] 0.0
          %342 = vst [vmem:[#allocation2 + $0x1a0] sm:$0xff] 0.0
          %343 = vst [vmem:[#allocation2 + $0x1a8] sm:$0xff] 0.0
          %344 = vst [vmem:[#allocation2 + $0x1b0] sm:$0xff] 0.0
          %345 = vst [vmem:[#allocation2 + $0x1b8] sm:$0xff] 0.0
          %346 = vst [vmem:[#allocation2 + $0x1c0] sm:$0xff] 0.0
          %347 = vst [vmem:[#allocation2 + $0x1c8] sm:$0xff] 0.0
          %348 = vst [vmem:[#allocation2 + $0x1d0] sm:$0xff] 0.0
          %349 = vst [vmem:[#allocation2 + $0x1d8] sm:$0xff] 0.0
          %350 = vst [vmem:[#allocation2 + $0x1e0] sm:$0xff] 0.0
          %351 = vst [vmem:[#allocation2 + $0x1e8] sm:$0xff] 0.0
          %352 = vst [vmem:[#allocation2 + $0x1f0] sm:$0xff] 0.0
          %353 = vst [vmem:[#allocation2 + $0x1f8] sm:$0xff] 0.0
        $region44: #{tpu_custom_call.1} parent=31 // pred_fallthru
          _
        %v354 = vld [vmem:[#allocation2] sm:$0xff]
        %v355 = vld [vmem:[#allocation2 + $0x8] sm:$0xff]
        %v356 = vld [vmem:[#allocation2 + $0x10] sm:$0xff]
        %v357 = vld [vmem:[#allocation2 + $0x18] sm:$0xff]
        %v358 = vld [vmem:[#allocation2 + $0x20] sm:$0xff]
        %v359 = vld [vmem:[#allocation2 + $0x28] sm:$0xff]
        %v360 = vld [vmem:[#allocation2 + $0x30] sm:$0xff]
        %v361 = vld [vmem:[#allocation2 + $0x38] sm:$0xff]
        %v362 = vld [vmem:[#allocation2 + $0x40] sm:$0xff]
        %v363 = vld [vmem:[#allocation2 + $0x48] sm:$0xff]
        %v364 = vld [vmem:[#allocation2 + $0x50] sm:$0xff]
        %v365 = vld [vmem:[#allocation2 + $0x58] sm:$0xff]
        %v366 = vld [vmem:[#allocation2 + $0x60] sm:$0xff]
        %v367 = vld [vmem:[#allocation2 + $0x68] sm:$0xff]
        %v368 = vld [vmem:[#allocation2 + $0x70] sm:$0xff]
        %v369 = vld [vmem:[#allocation2 + $0x78] sm:$0xff]
        %v370 = vld [vmem:[#allocation2 + $0x80] sm:$0xff]
        %v371 = vld [vmem:[#allocation2 + $0x88] sm:$0xff]
        %v372 = vld [vmem:[#allocation2 + $0x90] sm:$0xff]
        %v373 = vld [vmem:[#allocation2 + $0x98] sm:$0xff]
        %v374 = vld [vmem:[#allocation2 + $0xa0] sm:$0xff]
        %v375 = vld [vmem:[#allocation2 + $0xa8] sm:$0xff]
        %v376 = vld [vmem:[#allocation2 + $0xb0] sm:$0xff]
        %v377 = vld [vmem:[#allocation2 + $0xb8] sm:$0xff]
        %v378 = vld [vmem:[#allocation2 + $0xc0] sm:$0xff]
        %v379 = vld [vmem:[#allocation2 + $0xc8] sm:$0xff]
        %v380 = vld [vmem:[#allocation2 + $0xd0] sm:$0xff]
        %v381 = vld [vmem:[#allocation2 + $0xd8] sm:$0xff]
        %v382 = vld [vmem:[#allocation2 + $0xe0] sm:$0xff]
        %v383 = vld [vmem:[#allocation2 + $0xe8] sm:$0xff]
        %v384 = vld [vmem:[#allocation2 + $0xf0] sm:$0xff]
        %v385 = vld [vmem:[#allocation2 + $0xf8] sm:$0xff]
        %v386 = vld [vmem:[#allocation2 + $0x100] sm:$0xff]
        %v387 = vld [vmem:[#allocation2 + $0x108] sm:$0xff]
        %v388 = vld [vmem:[#allocation2 + $0x110] sm:$0xff]
        %v389 = vld [vmem:[#allocation2 + $0x118] sm:$0xff]
        %v390 = vld [vmem:[#allocation2 + $0x120] sm:$0xff]
        %v391 = vld [vmem:[#allocation2 + $0x128] sm:$0xff]
        %v392 = vld [vmem:[#allocation2 + $0x130] sm:$0xff]
        %v393 = vld [vmem:[#allocation2 + $0x138] sm:$0xff]
        %v394 = vld [vmem:[#allocation2 + $0x140] sm:$0xff]
        %v395 = vld [vmem:[#allocation2 + $0x148] sm:$0xff]
        %v396 = vld [vmem:[#allocation2 + $0x150] sm:$0xff]
        %v397 = vld [vmem:[#allocation2 + $0x158] sm:$0xff]
        %v398 = vld [vmem:[#allocation2 + $0x160] sm:$0xff]
        %v399 = vld [vmem:[#allocation2 + $0x168] sm:$0xff]
        %v400 = vld [vmem:[#allocation2 + $0x170] sm:$0xff]
        %v401 = vld [vmem:[#allocation2 + $0x178] sm:$0xff]
        %v402 = vld [vmem:[#allocation2 + $0x180] sm:$0xff]
        %v403 = vld [vmem:[#allocation2 + $0x188] sm:$0xff]
        %v404 = vld [vmem:[#allocation2 + $0x190] sm:$0xff]
        %v405 = vld [vmem:[#allocation2 + $0x198] sm:$0xff]
        %v406 = vld [vmem:[#allocation2 + $0x1a0] sm:$0xff]
        %v407 = vld [vmem:[#allocation2 + $0x1a8] sm:$0xff]
        %v408 = vld [vmem:[#allocation2 + $0x1b0] sm:$0xff]
        %v409 = vld [vmem:[#allocation2 + $0x1b8] sm:$0xff]
        %v410 = vld [vmem:[#allocation2 + $0x1c0] sm:$0xff]
        %v411 = vld [vmem:[#allocation2 + $0x1c8] sm:$0xff]
        %v412 = vld [vmem:[#allocation2 + $0x1d0] sm:$0xff]
        %v413 = vld [vmem:[#allocation2 + $0x1d8] sm:$0xff]
        %v414 = vld [vmem:[#allocation2 + $0x1e0] sm:$0xff]
        %v415 = vld [vmem:[#allocation2 + $0x1e8] sm:$0xff]
        %v416 = vld [vmem:[#allocation2 + $0x1f0] sm:$0xff]
        %v417 = vld [vmem:[#allocation2 + $0x1f8] sm:$0xff]
        %v418 = vld [vmem:[%s233] sm:$0xff]
        %v419 = vld [vmem:[%s233 + $0x8] sm:$0xf]
        %v420 = vld [vmem:[%s233 + $0xc] sm:$0xff]
        %v421 = vld [vmem:[%s233 + $0x14] sm:$0xf]
        %v422 = vld [vmem:[%s233 + $0x18] sm:$0xff]
        %v423 = vld [vmem:[%s233 + $0x20] sm:$0xf]
        %v424 = vld [vmem:[%s233 + $0x24] sm:$0xff]
        %v425 = vld [vmem:[%s233 + $0x2c] sm:$0xf]
        %v426 = vld [vmem:[%s233 + $0x30] sm:$0xff]
        %v427 = vld [vmem:[%s233 + $0x38] sm:$0xf]
        %v428 = vld [vmem:[%s233 + $0x3c] sm:$0xff]
        %v429 = vld [vmem:[%s233 + $0x44] sm:$0xf]
        %v430 = vld [vmem:[%s233 + $0x48] sm:$0xff]
        %v431 = vld [vmem:[%s233 + $0x50] sm:$0xf]
        %v432 = vld [vmem:[%s233 + $0x54] sm:$0xff]
        %v433 = vld [vmem:[%s233 + $0x5c] sm:$0xf]
        %v434 = vld [vmem:[%s233 + $0x60] sm:$0xff]
        %v435 = vld [vmem:[%s233 + $0x68] sm:$0xf]
        %v436 = vld [vmem:[%s233 + $0x6c] sm:$0xff]
        %v437 = vld [vmem:[%s233 + $0x74] sm:$0xf]
        %v438 = vld [vmem:[%s233 + $0x78] sm:$0xff]
        %v439 = vld [vmem:[%s233 + $0x80] sm:$0xf]
        %v440 = vld [vmem:[%s233 + $0x84] sm:$0xff]
        %v441 = vld [vmem:[%s233 + $0x8c] sm:$0xf]
        %v442 = vld [vmem:[%s233 + $0x90] sm:$0xff]
        %v443 = vld [vmem:[%s233 + $0x98] sm:$0xf]
        %v444 = vld [vmem:[%s233 + $0x9c] sm:$0xff]
        %v445 = vld [vmem:[%s233 + $0xa4] sm:$0xf]
        %v446 = vld [vmem:[%s233 + $0xa8] sm:$0xff]
        %v447 = vld [vmem:[%s233 + $0xb0] sm:$0xf]
        %v448 = vld [vmem:[%s233 + $0xb4] sm:$0xff]
        %v449 = vld [vmem:[%s233 + $0xbc] sm:$0xf]
        %v450 = vld [vmem:[%s233 + $0xc0] sm:$0xff]
        %v451 = vld [vmem:[%s233 + $0xc8] sm:$0xf]
        %v452 = vld [vmem:[%s233 + $0xcc] sm:$0xff]
        %v453 = vld [vmem:[%s233 + $0xd4] sm:$0xf]
        %v454 = vld [vmem:[%s233 + $0xd8] sm:$0xff]
        %v455 = vld [vmem:[%s233 + $0xe0] sm:$0xf]
        %v456 = vld [vmem:[%s233 + $0xe4] sm:$0xff]
        %v457 = vld [vmem:[%s233 + $0xec] sm:$0xf]
        %v458 = vld [vmem:[%s233 + $0xf0] sm:$0xff]
        %v459 = vld [vmem:[%s233 + $0xf8] sm:$0xf]
        %v460 = vld [vmem:[%s233 + $0xfc] sm:$0xff]
        %v461 = vld [vmem:[%s233 + $0x104] sm:$0xf]
        %v462 = vld [vmem:[%s233 + $0x108] sm:$0xff]
        %v463 = vld [vmem:[%s233 + $0x110] sm:$0xf]
        %v464 = vld [vmem:[%s233 + $0x114] sm:$0xff]
        %v465 = vld [vmem:[%s233 + $0x11c] sm:$0xf]
        %v466 = vld [vmem:[%s233 + $0x120] sm:$0xff]
        %v467 = vld [vmem:[%s233 + $0x128] sm:$0xf]
        %v468 = vld [vmem:[%s233 + $0x12c] sm:$0xff]
        %v469 = vld [vmem:[%s233 + $0x134] sm:$0xf]
        %v470 = vld [vmem:[%s233 + $0x138] sm:$0xff]
        %v471 = vld [vmem:[%s233 + $0x140] sm:$0xf]
        %v472 = vld [vmem:[%s233 + $0x144] sm:$0xff]
        %v473 = vld [vmem:[%s233 + $0x14c] sm:$0xf]
        %v474 = vld [vmem:[%s233 + $0x150] sm:$0xff]
        %v475 = vld [vmem:[%s233 + $0x158] sm:$0xf]
        %v476 = vld [vmem:[%s233 + $0x15c] sm:$0xff]
        %v477 = vld [vmem:[%s233 + $0x164] sm:$0xf]
        %v478 = vld [vmem:[%s233 + $0x168] sm:$0xff]
        %v479 = vld [vmem:[%s233 + $0x170] sm:$0xf]
        %v480 = vld [vmem:[%s233 + $0x174] sm:$0xff]
        %v481 = vld [vmem:[%s233 + $0x17c] sm:$0xf]
        %v482 = vld [vmem:[#allocation6] sm:$0xff]
        %v483 = vld [vmem:[#allocation6 + $0x8] sm:$0xff]
        %v484 = vld [vmem:[#allocation6 + $0x10] sm:$0xff]
        %v485 = vld [vmem:[#allocation6 + $0x18] sm:$0xff]
        %v486 = vld [vmem:[#allocation6 + $0x20] sm:$0xff]
        %v487 = vld [vmem:[#allocation6 + $0x28] sm:$0xff]
        %v488 = vld [vmem:[#allocation6 + $0x30] sm:$0xff]
        %v489 = vld [vmem:[#allocation6 + $0x38] sm:$0xff]
        %v490 = vld [vmem:[#allocation6 + $0x40] sm:$0xff]
        %v491 = vld [vmem:[#allocation6 + $0x48] sm:$0xff]
        %v492 = vld [vmem:[#allocation6 + $0x50] sm:$0xff]
        %v493 = vld [vmem:[#allocation6 + $0x58] sm:$0xff]
        %v494 = vld [vmem:[#allocation6 + $0x60] sm:$0xff]
        %v495 = vld [vmem:[#allocation6 + $0x68] sm:$0xff]
        %v496 = vld [vmem:[#allocation6 + $0x70] sm:$0xff]
        %v497 = vld [vmem:[#allocation6 + $0x78] sm:$0xff]
        %v498 = vld [vmem:[#allocation6 + $0x80] sm:$0xff]
        %v499 = vld [vmem:[#allocation6 + $0x88] sm:$0xff]
        %v500 = vld [vmem:[#allocation6 + $0x90] sm:$0xff]
        %v501 = vld [vmem:[#allocation6 + $0x98] sm:$0xff]
        %v502 = vld [vmem:[#allocation6 + $0xa0] sm:$0xff]
        %v503 = vld [vmem:[#allocation6 + $0xa8] sm:$0xff]
        %v504 = vld [vmem:[#allocation6 + $0xb0] sm:$0xff]
        %v505 = vld [vmem:[#allocation6 + $0xb8] sm:$0xff]
        %v506 = vld [vmem:[#allocation6 + $0xc0] sm:$0xff]
        %v507 = vld [vmem:[#allocation6 + $0xc8] sm:$0xff]
        %v508 = vld [vmem:[#allocation6 + $0xd0] sm:$0xff]
        %v509 = vld [vmem:[#allocation6 + $0xd8] sm:$0xff]
        %v510 = vld [vmem:[#allocation6 + $0xe0] sm:$0xff]
        %v511 = vld [vmem:[#allocation6 + $0xe8] sm:$0xff]
        %v512 = vld [vmem:[#allocation6 + $0xf0] sm:$0xff]
        %v513 = vld [vmem:[#allocation6 + $0xf8] sm:$0xff]
        %v514 = vld [vmem:[#allocation6 + $0x100] sm:$0xff]
        %v515 = vld [vmem:[#allocation6 + $0x108] sm:$0xff]
        %v516 = vld [vmem:[#allocation6 + $0x110] sm:$0xff]
        %v517 = vld [vmem:[#allocation6 + $0x118] sm:$0xff]
        %v518 = vld [vmem:[#allocation6 + $0x120] sm:$0xff]
        %v519 = vld [vmem:[#allocation6 + $0x128] sm:$0xff]
        %v520 = vld [vmem:[#allocation6 + $0x130] sm:$0xff]
        %v521 = vld [vmem:[#allocation6 + $0x138] sm:$0xff]
        %v522 = vld [vmem:[#allocation6 + $0x140] sm:$0xff]
        %v523 = vld [vmem:[#allocation6 + $0x148] sm:$0xff]
        %v524 = vld [vmem:[#allocation6 + $0x150] sm:$0xff]
        %v525 = vld [vmem:[#allocation6 + $0x158] sm:$0xff]
        %v526 = vld [vmem:[#allocation6 + $0x160] sm:$0xff]
        %v527 = vld [vmem:[#allocation6 + $0x168] sm:$0xff]
        %v528 = vld [vmem:[#allocation6 + $0x170] sm:$0xff]
        %v529 = vld [vmem:[#allocation6 + $0x178] sm:$0xff]
        %v594 = vunpack.c.l.b16 %v418
        %v595 = vunpack.c.h.b16 %v418
        %v596 = vunpack.c.l.b16 %v419
        %v597 = vunpack.c.l.b16 %v420
        %v598 = vunpack.c.h.b16 %v420
        %v599 = vunpack.c.l.b16 %v421
        %v600 = vunpack.c.l.b16 %v422
        %v601 = vunpack.c.h.b16 %v422
        %v602 = vunpack.c.l.b16 %v423
        %v603 = vunpack.c.l.b16 %v424
        %v604 = vunpack.c.h.b16 %v424
        %v605 = vunpack.c.l.b16 %v425
        %v606 = vunpack.c.l.b16 %v426
        %v607 = vunpack.c.h.b16 %v426
        %v608 = vunpack.c.l.b16 %v427
        %v609 = vunpack.c.l.b16 %v428
        %v610 = vunpack.c.h.b16 %v428
        %v611 = vunpack.c.l.b16 %v429
        %v612 = vunpack.c.l.b16 %v430
        %v613 = vunpack.c.h.b16 %v430
        %v614 = vunpack.c.l.b16 %v431
        %v615 = vunpack.c.l.b16 %v432
        %v616 = vunpack.c.h.b16 %v432
        %v617 = vunpack.c.l.b16 %v433
        %v618 = vunpack.c.l.b16 %v434
        %v619 = vunpack.c.h.b16 %v434
        %v620 = vunpack.c.l.b16 %v435
        %v621 = vunpack.c.l.b16 %v436
        %v622 = vunpack.c.h.b16 %v436
        %v623 = vunpack.c.l.b16 %v437
        %v624 = vunpack.c.l.b16 %v438
        %v625 = vunpack.c.h.b16 %v438
        %v626 = vunpack.c.l.b16 %v439
        %v627 = vunpack.c.l.b16 %v440
        %v628 = vunpack.c.h.b16 %v440
        %v629 = vunpack.c.l.b16 %v441
        %v630 = vunpack.c.l.b16 %v442
        %v631 = vunpack.c.h.b16 %v442
        %v632 = vunpack.c.l.b16 %v443
        %v633 = vunpack.c.l.b16 %v444
        %v634 = vunpack.c.h.b16 %v444
        %v635 = vunpack.c.l.b16 %v445
        %v636 = vunpack.c.l.b16 %v446
        %v637 = vunpack.c.h.b16 %v446
        %v638 = vunpack.c.l.b16 %v447
        %v639 = vunpack.c.l.b16 %v448
        %v640 = vunpack.c.h.b16 %v448
        %v641 = vunpack.c.l.b16 %v449
        %v642 = vunpack.c.l.b16 %v450
        %v643 = vunpack.c.h.b16 %v450
        %v644 = vunpack.c.l.b16 %v451
        %v645 = vunpack.c.l.b16 %v452
        %v646 = vunpack.c.h.b16 %v452
        %v647 = vunpack.c.l.b16 %v453
        %v648 = vunpack.c.l.b16 %v454
        %v649 = vunpack.c.h.b16 %v454
        %v650 = vunpack.c.l.b16 %v455
        %v651 = vunpack.c.l.b16 %v456
        %v652 = vunpack.c.h.b16 %v456
        %v653 = vunpack.c.l.b16 %v457
        %v654 = vunpack.c.l.b16 %v458
        %v655 = vunpack.c.h.b16 %v458
        %v656 = vunpack.c.l.b16 %v459
        %v657 = vunpack.c.l.b16 %v460
        %v658 = vunpack.c.h.b16 %v460
        %v659 = vunpack.c.l.b16 %v461
        %v660 = vunpack.c.l.b16 %v462
        %v661 = vunpack.c.h.b16 %v462
        %v662 = vunpack.c.l.b16 %v463
        %v663 = vunpack.c.l.b16 %v464
        %v664 = vunpack.c.h.b16 %v464
        %v665 = vunpack.c.l.b16 %v465
        %v666 = vunpack.c.l.b16 %v466
        %v667 = vunpack.c.h.b16 %v466
        %v668 = vunpack.c.l.b16 %v467
        %v669 = vunpack.c.l.b16 %v468
        %v670 = vunpack.c.h.b16 %v468
        %v671 = vunpack.c.l.b16 %v469
        %v672 = vunpack.c.l.b16 %v470
        %v673 = vunpack.c.h.b16 %v470
        %v674 = vunpack.c.l.b16 %v471
        %v675 = vunpack.c.l.b16 %v472
        %v676 = vunpack.c.h.b16 %v472
        %v677 = vunpack.c.l.b16 %v473
        %v678 = vunpack.c.l.b16 %v474
        %v679 = vunpack.c.h.b16 %v474
        %v680 = vunpack.c.l.b16 %v475
        %v681 = vunpack.c.l.b16 %v476
        %v682 = vunpack.c.h.b16 %v476
        %v683 = vunpack.c.l.b16 %v477
        %v684 = vunpack.c.l.b16 %v478
        %v685 = vunpack.c.h.b16 %v478
        %v686 = vunpack.c.l.b16 %v479
        %v687 = vunpack.c.l.b16 %v480
        %v688 = vunpack.c.h.b16 %v480
        %v689 = vunpack.c.l.b16 %v481
        %v690 = vpack.c.b16 %v597, %v594
        %v691 = vpack.c.b16 %v598, %v595
        %v692 = vpack.c.b16 %v599, %v596
        %v693 = vpack.c.b16 %v603, %v600
        %v694 = vpack.c.b16 %v604, %v601
        %v695 = vpack.c.b16 %v605, %v602
        %v696 = vpack.c.b16 %v609, %v606
        %v697 = vpack.c.b16 %v610, %v607
        %v698 = vpack.c.b16 %v611, %v608
        %v699 = vpack.c.b16 %v615, %v612
        %v700 = vpack.c.b16 %v616, %v613
        %v701 = vpack.c.b16 %v617, %v614
        %v702 = vpack.c.b16 %v621, %v618
        %v703 = vpack.c.b16 %v622, %v619
        %v704 = vpack.c.b16 %v623, %v620
        %v705 = vpack.c.b16 %v627, %v624
        %v706 = vpack.c.b16 %v628, %v625
        %v707 = vpack.c.b16 %v629, %v626
        %v708 = vpack.c.b16 %v633, %v630
        %v709 = vpack.c.b16 %v634, %v631
        %v710 = vpack.c.b16 %v635, %v632
        %v711 = vpack.c.b16 %v639, %v636
        %v712 = vpack.c.b16 %v640, %v637
        %v713 = vpack.c.b16 %v641, %v638
        %v714 = vpack.c.b16 %v645, %v642
        %v715 = vpack.c.b16 %v646, %v643
        %v716 = vpack.c.b16 %v647, %v644
        %v717 = vpack.c.b16 %v651, %v648
        %v718 = vpack.c.b16 %v652, %v649
        %v719 = vpack.c.b16 %v653, %v650
        %v720 = vpack.c.b16 %v657, %v654
        %v721 = vpack.c.b16 %v658, %v655
        %v722 = vpack.c.b16 %v659, %v656
        %v723 = vpack.c.b16 %v663, %v660
        %v724 = vpack.c.b16 %v664, %v661
        %v725 = vpack.c.b16 %v665, %v662
        %v726 = vpack.c.b16 %v669, %v666
        %v727 = vpack.c.b16 %v670, %v667
        %v728 = vpack.c.b16 %v671, %v668
        %v729 = vpack.c.b16 %v675, %v672
        %v730 = vpack.c.b16 %v676, %v673
        %v731 = vpack.c.b16 %v677, %v674
        %v732 = vpack.c.b16 %v681, %v678
        %v733 = vpack.c.b16 %v682, %v679
        %v734 = vpack.c.b16 %v683, %v680
        %v735 = vpack.c.b16 %v687, %v684
        %v736 = vpack.c.b16 %v688, %v685
        %v737 = vpack.c.b16 %v689, %v686
        %v834 = vunpack.c.l.b16 %v482
        %v835 = vunpack.c.h.b16 %v482
        %v836 = vunpack.c.l.b16 %v483
        %v837 = vunpack.c.h.b16 %v483
        %v838 = vunpack.c.l.b16 %v484
        %v839 = vunpack.c.h.b16 %v484
        %v840 = vunpack.c.l.b16 %v485
        %v841 = vunpack.c.h.b16 %v485
        %v842 = vunpack.c.l.b16 %v486
        %v843 = vunpack.c.h.b16 %v486
        %v844 = vunpack.c.l.b16 %v487
        %v845 = vunpack.c.h.b16 %v487
        %v846 = vunpack.c.l.b16 %v488
        %v847 = vunpack.c.h.b16 %v488
        %v848 = vunpack.c.l.b16 %v489
        %v849 = vunpack.c.h.b16 %v489
        %v850 = vunpack.c.l.b16 %v490
        %v851 = vunpack.c.h.b16 %v490
        %v852 = vunpack.c.l.b16 %v491
        %v853 = vunpack.c.h.b16 %v491
        %v854 = vunpack.c.l.b16 %v492
        %v855 = vunpack.c.h.b16 %v492
        %v856 = vunpack.c.l.b16 %v493
        %v857 = vunpack.c.h.b16 %v493
        %v858 = vunpack.c.l.b16 %v494
        %v859 = vunpack.c.h.b16 %v494
        %v860 = vunpack.c.l.b16 %v495
        %v861 = vunpack.c.h.b16 %v495
        %v862 = vunpack.c.l.b16 %v496
        %v863 = vunpack.c.h.b16 %v496
        %v864 = vunpack.c.l.b16 %v497
        %v865 = vunpack.c.h.b16 %v497
        %v866 = vunpack.c.l.b16 %v498
        %v867 = vunpack.c.h.b16 %v498
        %v868 = vunpack.c.l.b16 %v499
        %v869 = vunpack.c.h.b16 %v499
        %v870 = vunpack.c.l.b16 %v500
        %v871 = vunpack.c.h.b16 %v500
        %v872 = vunpack.c.l.b16 %v501
        %v873 = vunpack.c.h.b16 %v501
        %v874 = vunpack.c.l.b16 %v502
        %v875 = vunpack.c.h.b16 %v502
        %v876 = vunpack.c.l.b16 %v503
        %v877 = vunpack.c.h.b16 %v503
        %v878 = vunpack.c.l.b16 %v504
        %v879 = vunpack.c.h.b16 %v504
        %v880 = vunpack.c.l.b16 %v505
        %v881 = vunpack.c.h.b16 %v505
        %v882 = vunpack.c.l.b16 %v506
        %v883 = vunpack.c.h.b16 %v506
        %v884 = vunpack.c.l.b16 %v507
        %v885 = vunpack.c.h.b16 %v507
        %v886 = vunpack.c.l.b16 %v508
        %v887 = vunpack.c.h.b16 %v508
        %v888 = vunpack.c.l.b16 %v509
        %v889 = vunpack.c.h.b16 %v509
        %v890 = vunpack.c.l.b16 %v510
        %v891 = vunpack.c.h.b16 %v510
        %v892 = vunpack.c.l.b16 %v511
        %v893 = vunpack.c.h.b16 %v511
        %v894 = vunpack.c.l.b16 %v512
        %v895 = vunpack.c.h.b16 %v512
        %v896 = vunpack.c.l.b16 %v513
        %v897 = vunpack.c.h.b16 %v513
        %v898 = vunpack.c.l.b16 %v514
        %v899 = vunpack.c.h.b16 %v514
        %v900 = vunpack.c.l.b16 %v515
        %v901 = vunpack.c.h.b16 %v515
        %v902 = vunpack.c.l.b16 %v516
        %v903 = vunpack.c.h.b16 %v516
        %v904 = vunpack.c.l.b16 %v517
        %v905 = vunpack.c.h.b16 %v517
        %v906 = vunpack.c.l.b16 %v518
        %v907 = vunpack.c.h.b16 %v518
        %v908 = vunpack.c.l.b16 %v519
        %v909 = vunpack.c.h.b16 %v519
        %v910 = vunpack.c.l.b16 %v520
        %v911 = vunpack.c.h.b16 %v520
        %v912 = vunpack.c.l.b16 %v521
        %v913 = vunpack.c.h.b16 %v521
        %v914 = vunpack.c.l.b16 %v522
        %v915 = vunpack.c.h.b16 %v522
        %v916 = vunpack.c.l.b16 %v523
        %v917 = vunpack.c.h.b16 %v523
        %v918 = vunpack.c.l.b16 %v524
        %v919 = vunpack.c.h.b16 %v524
        %v920 = vunpack.c.l.b16 %v525
        %v921 = vunpack.c.h.b16 %v525
        %v922 = vunpack.c.l.b16 %v526
        %v923 = vunpack.c.h.b16 %v526
        %v924 = vunpack.c.l.b16 %v527
        %v925 = vunpack.c.h.b16 %v527
        %v926 = vunpack.c.l.b16 %v528
        %v927 = vunpack.c.h.b16 %v528
        %v928 = vunpack.c.l.b16 %v529
        %v929 = vunpack.c.h.b16 %v529
        %v930 = vpack.c.b16 %v836, %v834
        %v931 = vpack.c.b16 %v837, %v835
        %v932 = vpack.c.b16 %v840, %v838
        %v933 = vpack.c.b16 %v841, %v839
        %v934 = vpack.c.b16 %v844, %v842
        %v935 = vpack.c.b16 %v845, %v843
        %v936 = vpack.c.b16 %v848, %v846
        %v937 = vpack.c.b16 %v849, %v847
        %v938 = vpack.c.b16 %v852, %v850
        %v939 = vpack.c.b16 %v853, %v851
        %v940 = vpack.c.b16 %v856, %v854
        %v941 = vpack.c.b16 %v857, %v855
        %v942 = vpack.c.b16 %v860, %v858
        %v943 = vpack.c.b16 %v861, %v859
        %v944 = vpack.c.b16 %v864, %v862
        %v945 = vpack.c.b16 %v865, %v863
        %v946 = vpack.c.b16 %v868, %v866
        %v947 = vpack.c.b16 %v869, %v867
        %v948 = vpack.c.b16 %v872, %v870
        %v949 = vpack.c.b16 %v873, %v871
        %v950 = vpack.c.b16 %v876, %v874
        %v951 = vpack.c.b16 %v877, %v875
        %v952 = vpack.c.b16 %v880, %v878
        %v953 = vpack.c.b16 %v881, %v879
        %v954 = vpack.c.b16 %v884, %v882
        %v955 = vpack.c.b16 %v885, %v883
        %v956 = vpack.c.b16 %v888, %v886
        %v957 = vpack.c.b16 %v889, %v887
        %v958 = vpack.c.b16 %v892, %v890
        %v959 = vpack.c.b16 %v893, %v891
        %v960 = vpack.c.b16 %v896, %v894
        %v961 = vpack.c.b16 %v897, %v895
        %v962 = vpack.c.b16 %v900, %v898
        %v963 = vpack.c.b16 %v901, %v899
        %v964 = vpack.c.b16 %v904, %v902
        %v965 = vpack.c.b16 %v905, %v903
        %v966 = vpack.c.b16 %v908, %v906
        %v967 = vpack.c.b16 %v909, %v907
        %v968 = vpack.c.b16 %v912, %v910
        %v969 = vpack.c.b16 %v913, %v911
        %v970 = vpack.c.b16 %v916, %v914
        %v971 = vpack.c.b16 %v917, %v915
        %v972 = vpack.c.b16 %v920, %v918
        %v973 = vpack.c.b16 %v921, %v919
        %v974 = vpack.c.b16 %v924, %v922
        %v975 = vpack.c.b16 %v925, %v923
        %v976 = vpack.c.b16 %v928, %v926
        %v977 = vpack.c.b16 %v929, %v927
        %1026 = vmatprep.subr.bf16.mxu0 %v931
        %1027 = vmatpush1.bf16.msra.mxu0 %v930
        %1028 = vmatprep.subr.bf16.mxu0 %v933
        %1029 = vmatpush1.bf16.msra.mxu0 %v932
        %1030 = vmatprep.subr.bf16.mxu0 %v935
        %1031 = vmatpush1.bf16.msra.mxu0 %v934
        %1032 = vmatprep.subr.bf16.mxu0 %v937
        %1033 = vmatpush1.bf16.msra.mxu0 %v936
        %1034 = vmatprep.subr.bf16.mxu0 %v939
        %1035 = vmatpush1.bf16.msra.mxu0 %v938
        %1036 = vmatprep.subr.bf16.mxu0 %v941
        %1037 = vmatpush1.bf16.msra.mxu0 %v940
        %1038 = vmatprep.subr.bf16.mxu0 %v943
        %1039 = vmatpush1.bf16.msra.mxu0 %v942
        %1040 = vmatprep.subr.bf16.mxu0 %v945
        %1041 = vmatpush1.bf16.msra.mxu0 %v944
        %1042 = vmatprep.subr.bf16.mxu0 %v947
        %1043 = vmatpush1.bf16.msra.mxu0 %v946
        %1044 = vmatprep.subr.bf16.mxu0 %v949
        %1045 = vmatpush1.bf16.msra.mxu0 %v948
        %1046 = vmatprep.subr.bf16.mxu0 %v951
        %1047 = vmatpush1.bf16.msra.mxu0 %v950
        %1048 = vmatprep.subr.bf16.mxu0 %v953
        %1049 = vmatpush1.bf16.msra.mxu0 %v952
        %1050 = vmatprep.subr.bf16.mxu0 %v955
        %1051 = vmatpush1.bf16.msra.mxu0 %v954
        %1052 = vmatprep.subr.bf16.mxu0 %v957
        %1053 = vmatpush1.bf16.msra.mxu0 %v956
        %1054 = vmatprep.subr.bf16.mxu0 %v959
        %1055 = vmatpush1.bf16.msra.mxu0 %v958
        %1056 = vmatprep.subr.bf16.mxu0 %v961
        %1057 = vmatpush1.bf16.msra.mxu0 %v960
        %1058 = vmatprep.mubr.bf16.mxu0 %v691
        %1059 = vmatmul.mubr.bf16.gmra.mrb[0].mxu0 %v690
        %v1060 = vpop.f32.mrb[0].mxu0
        %v1061 = vadd.f32 0.0, %v1060
        %v1062 = vpop.f32.mrb[0].mxu0
        %v1063 = vadd.f32 0.0, %v1062
        %v1064 = vpop.f32.mrb[0].mxu0
        %v1065 = vadd.f32 0.0, %v1064
        %v1066 = vpop.f32.mrb[0].mxu0
        %v1067 = vadd.f32 0.0, %v1066
        %1068 = vmatprep.mubr.bf16.mxu0 %v694
        %1069 = vmatmul.mubr.bf16.gmra.mrb[0].mxu0 %v693
        %v1070 = vpop.f32.mrb[0].mxu0
        %v1071 = vadd.f32 0.0, %v1070
        %v1072 = vpop.f32.mrb[0].mxu0
        %v1073 = vadd.f32 0.0, %v1072
        %v1074 = vpop.f32.mrb[0].mxu0
        %v1075 = vadd.f32 0.0, %v1074
        %v1076 = vpop.f32.mrb[0].mxu0
        %v1077 = vadd.f32 0.0, %v1076
        %1078 = vmatprep.mubr.bf16.mxu0 %v697
        %1079 = vmatmul.mubr.bf16.gmra.mrb[0].mxu0 %v696
        %v1080 = vpop.f32.mrb[0].mxu0
        %v1081 = vadd.f32 0.0, %v1080
        %v1082 = vpop.f32.mrb[0].mxu0
        %v1083 = vadd.f32 0.0, %v1082
        %v1084 = vpop.f32.mrb[0].mxu0
        %v1085 = vadd.f32 0.0, %v1084
        %v1086 = vpop.f32.mrb[0].mxu0
        %v1087 = vadd.f32 0.0, %v1086
        %1088 = vmatprep.mubr.bf16.mxu0 %v700
        %1089 = vmatmul.mubr.bf16.gmra.mrb[0].mxu0 %v699
        %v1090 = vpop.f32.mrb[0].mxu0
        %v1091 = vadd.f32 0.0, %v1090
        %v1092 = vpop.f32.mrb[0].mxu0
        %v1093 = vadd.f32 0.0, %v1092
        %v1094 = vpop.f32.mrb[0].mxu0
        %v1095 = vadd.f32 0.0, %v1094
        %v1096 = vpop.f32.mrb[0].mxu0
        %v1097 = vadd.f32 0.0, %v1096
        %1098 = vmatprep.mubr.bf16.mxu0 %v703
        %1099 = vmatmul.mubr.bf16.gmra.mrb[0].mxu0 %v702
        %v1100 = vpop.f32.mrb[0].mxu0
        %v1101 = vadd.f32 0.0, %v1100
        %v1102 = vpop.f32.mrb[0].mxu0
        %v1103 = vadd.f32 0.0, %v1102
        %v1104 = vpop.f32.mrb[0].mxu0
        %v1105 = vadd.f32 0.0, %v1104
        %v1106 = vpop.f32.mrb[0].mxu0
        %v1107 = vadd.f32 0.0, %v1106
        %1108 = vmatprep.mubr.bf16.mxu0 %v706
        %1109 = vmatmul.mubr.bf16.gmra.mrb[0].mxu0 %v705
        %v1110 = vpop.f32.mrb[0].mxu0
        %v1111 = vadd.f32 0.0, %v1110
        %v1112 = vpop.f32.mrb[0].mxu0
        %v1113 = vadd.f32 0.0, %v1112
        %v1114 = vpop.f32.mrb[0].mxu0
        %v1115 = vadd.f32 0.0, %v1114
        %v1116 = vpop.f32.mrb[0].mxu0
        %v1117 = vadd.f32 0.0, %v1116
        %1118 = vmatprep.mubr.bf16.mxu0 %v709
        %1119 = vmatmul.mubr.bf16.gmra.mrb[0].mxu0 %v708
        %v1120 = vpop.f32.mrb[0].mxu0
        %v1121 = vadd.f32 0.0, %v1120
        %v1122 = vpop.f32.mrb[0].mxu0
        %v1123 = vadd.f32 0.0, %v1122
        %v1124 = vpop.f32.mrb[0].mxu0
        %v1125 = vadd.f32 0.0, %v1124
        %v1126 = vpop.f32.mrb[0].mxu0
        %v1127 = vadd.f32 0.0, %v1126
        %1128 = vmatprep.mubr.bf16.mxu0 %v712
        %1129 = vmatmul.mubr.bf16.gmra.mrb[0].mxu0 %v711
        %v1130 = vpop.f32.mrb[0].mxu0
        %v1131 = vadd.f32 0.0, %v1130
        %v1132 = vpop.f32.mrb[0].mxu0
        %v1133 = vadd.f32 0.0, %v1132
        %v1134 = vpop.f32.mrb[0].mxu0
        %v1135 = vadd.f32 0.0, %v1134
        %v1136 = vpop.f32.mrb[0].mxu0
        %v1137 = vadd.f32 0.0, %v1136
        %1138 = vmatprep.mubr.bf16.mxu0 %v715
        %1139 = vmatmul.mubr.bf16.gmra.mrb[0].mxu0 %v714
        %v1140 = vpop.f32.mrb[0].mxu0
        %v1141 = vadd.f32 0.0, %v1140
        %v1142 = vpop.f32.mrb[0].mxu0
        %v1143 = vadd.f32 0.0, %v1142
        %v1144 = vpop.f32.mrb[0].mxu0
        %v1145 = vadd.f32 0.0, %v1144
        %v1146 = vpop.f32.mrb[0].mxu0
        %v1147 = vadd.f32 0.0, %v1146
        %1148 = vmatprep.mubr.bf16.mxu0 %v718
        %1149 = vmatmul.mubr.bf16.gmra.mrb[0].mxu0 %v717
        %v1150 = vpop.f32.mrb[0].mxu0
        %v1151 = vadd.f32 0.0, %v1150
        %v1152 = vpop.f32.mrb[0].mxu0
        %v1153 = vadd.f32 0.0, %v1152
        %v1154 = vpop.f32.mrb[0].mxu0
        %v1155 = vadd.f32 0.0, %v1154
        %v1156 = vpop.f32.mrb[0].mxu0
        %v1157 = vadd.f32 0.0, %v1156
        %1158 = vmatprep.mubr.bf16.mxu0 %v721
        %1159 = vmatmul.mubr.bf16.gmra.mrb[0].mxu0 %v720
        %v1160 = vpop.f32.mrb[0].mxu0
        %v1161 = vadd.f32 0.0, %v1160
        %v1162 = vpop.f32.mrb[0].mxu0
        %v1163 = vadd.f32 0.0, %v1162
        %v1164 = vpop.f32.mrb[0].mxu0
        %v1165 = vadd.f32 0.0, %v1164
        %v1166 = vpop.f32.mrb[0].mxu0
        %v1167 = vadd.f32 0.0, %v1166
        %1168 = vmatprep.mubr.bf16.mxu0 %v724
        %1169 = vmatmul.mubr.bf16.gmra.mrb[0].mxu0 %v723
        %v1170 = vpop.f32.mrb[0].mxu0
        %v1171 = vadd.f32 0.0, %v1170
        %v1172 = vpop.f32.mrb[0].mxu0
        %v1173 = vadd.f32 0.0, %v1172
        %v1174 = vpop.f32.mrb[0].mxu0
        %v1175 = vadd.f32 0.0, %v1174
        %v1176 = vpop.f32.mrb[0].mxu0
        %v1177 = vadd.f32 0.0, %v1176
        %1178 = vmatprep.mubr.bf16.mxu0 %v727
        %1179 = vmatmul.mubr.bf16.gmra.mrb[0].mxu0 %v726
        %v1180 = vpop.f32.mrb[0].mxu0
        %v1181 = vadd.f32 0.0, %v1180
        %v1182 = vpop.f32.mrb[0].mxu0
        %v1183 = vadd.f32 0.0, %v1182
        %v1184 = vpop.f32.mrb[0].mxu0
        %v1185 = vadd.f32 0.0, %v1184
        %v1186 = vpop.f32.mrb[0].mxu0
        %v1187 = vadd.f32 0.0, %v1186
        %1188 = vmatprep.mubr.bf16.mxu0 %v730
        %1189 = vmatmul.mubr.bf16.gmra.mrb[0].mxu0 %v729
        %v1190 = vpop.f32.mrb[0].mxu0
        %v1191 = vadd.f32 0.0, %v1190
        %v1192 = vpop.f32.mrb[0].mxu0
        %v1193 = vadd.f32 0.0, %v1192
        %v1194 = vpop.f32.mrb[0].mxu0
        %v1195 = vadd.f32 0.0, %v1194
        %v1196 = vpop.f32.mrb[0].mxu0
        %v1197 = vadd.f32 0.0, %v1196
        %1198 = vmatprep.mubr.bf16.mxu0 %v733
        %1199 = vmatmul.mubr.bf16.gmra.mrb[0].mxu0 %v732
        %v1200 = vpop.f32.mrb[0].mxu0
        %v1201 = vadd.f32 0.0, %v1200
        %v1202 = vpop.f32.mrb[0].mxu0
        %v1203 = vadd.f32 0.0, %v1202
        %v1204 = vpop.f32.mrb[0].mxu0
        %v1205 = vadd.f32 0.0, %v1204
        %v1206 = vpop.f32.mrb[0].mxu0
        %v1207 = vadd.f32 0.0, %v1206
        %1208 = vmatprep.mubr.bf16.mxu0 %v736
        %1209 = vmatmul.mubr.bf16.gmra.mrb[0].mxu0 %v735
        %v1210 = vpop.f32.mrb[0].mxu0
        %v1211 = vadd.f32 0.0, %v1210
        %v1212 = vpop.f32.mrb[0].mxu0
        %v1213 = vadd.f32 0.0, %v1212
        %v1214 = vpop.f32.mrb[0].mxu0
        %v1215 = vadd.f32 0.0, %v1214
        %v1216 = vpop.f32.mrb[0].mxu0
        %v1217 = vadd.f32 0.0, %v1216
        %1218 = vdwg.mxu0
        %1219 = vmatprep.subr.bf16.mxu0 %v963
        %1220 = vmatpush1.bf16.msra.mxu0 %v962
        %1221 = vmatprep.subr.bf16.mxu0 %v965
        %1222 = vmatpush1.bf16.msra.mxu0 %v964
        %1223 = vmatprep.subr.bf16.mxu0 %v967
        %1224 = vmatpush1.bf16.msra.mxu0 %v966
        %1225 = vmatprep.subr.bf16.mxu0 %v969
        %1226 = vmatpush1.bf16.msra.mxu0 %v968
        %1227 = vmatprep.subr.bf16.mxu0 %v971
        %1228 = vmatpush1.bf16.msra.mxu0 %v970
        %1229 = vmatprep.subr.bf16.mxu0 %v973
        %1230 = vmatpush1.bf16.msra.mxu0 %v972
        %1231 = vmatprep.subr.bf16.mxu0 %v975
        %1232 = vmatpush1.bf16.msra.mxu0 %v974
        %1233 = vmatprep.subr.bf16.mxu0 %v977
        %1234 = vmatpush1.bf16.msra.mxu0 %v976
        %1235 = vmatprep.subr.bf16.mxu0 0
        %1236 = vmatpush1.bf16.msra.mxu0 0
        %1237 = vmatprep.subr.bf16.mxu0 0
        %1238 = vmatpush1.bf16.msra.mxu0 0
        %1239 = vmatprep.subr.bf16.mxu0 0
        %1240 = vmatpush1.bf16.msra.mxu0 0
        %1241 = vmatprep.subr.bf16.mxu0 0
        %1242 = vmatpush1.bf16.msra.mxu0 0
        %1243 = vmatprep.subr.bf16.mxu0 0
        %1244 = vmatpush1.bf16.msra.mxu0 0
        %1245 = vmatprep.subr.bf16.mxu0 0
        %1246 = vmatpush1.bf16.msra.mxu0 0
        %1247 = vmatprep.subr.bf16.mxu0 0
        %1248 = vmatpush1.bf16.msra.mxu0 0
        %1249 = vmatprep.subr.bf16.mxu0 0
        %1250 = vmatpush1.bf16.msra.mxu0 0
        %1251 = vmatprep.mubr.bf16.mxu0 0
        %1252 = vmatmul.mubr.bf16.gmra.mrb[0].mxu0 %v692
        %v1253 = vpop.f32.mrb[0].mxu0
        %v1254 = vadd.f32 %v1061, %v1253
        %v1255 = vpop.f32.mrb[0].mxu0
        %v1256 = vadd.f32 %v1063, %v1255
        %v1257 = vpop.f32.mrb[0].mxu0
        %v1258 = vadd.f32 %v1065, %v1257
        %v1259 = vpop.f32.mrb[0].mxu0
        %v1260 = vadd.f32 %v1067, %v1259
        %1261 = vmatprep.mubr.bf16.mxu0 0
        %1262 = vmatmul.mubr.bf16.gmra.mrb[0].mxu0 %v695
        %v1263 = vpop.f32.mrb[0].mxu0
        %v1264 = vadd.f32 %v1071, %v1263
        %v1265 = vpop.f32.mrb[0].mxu0
        %v1266 = vadd.f32 %v1073, %v1265
        %v1267 = vpop.f32.mrb[0].mxu0
        %v1268 = vadd.f32 %v1075, %v1267
        %v1269 = vpop.f32.mrb[0].mxu0
        %v1270 = vadd.f32 %v1077, %v1269
        %1271 = vmatprep.mubr.bf16.mxu0 0
        %1272 = vmatmul.mubr.bf16.gmra.mrb[0].mxu0 %v698
        %v1273 = vpop.f32.mrb[0].mxu0
        %v1274 = vadd.f32 %v1081, %v1273
        %v1275 = vpop.f32.mrb[0].mxu0
        %v1276 = vadd.f32 %v1083, %v1275
        %v1277 = vpop.f32.mrb[0].mxu0
        %v1278 = vadd.f32 %v1085, %v1277
        %v1279 = vpop.f32.mrb[0].mxu0
        %v1280 = vadd.f32 %v1087, %v1279
        %1281 = vmatprep.mubr.bf16.mxu0 0
        %1282 = vmatmul.mubr.bf16.gmra.mrb[0].mxu0 %v701
        %v1283 = vpop.f32.mrb[0].mxu0
        %v1284 = vadd.f32 %v1091, %v1283
        %v1285 = vpop.f32.mrb[0].mxu0
        %v1286 = vadd.f32 %v1093, %v1285
        %v1287 = vpop.f32.mrb[0].mxu0
        %v1288 = vadd.f32 %v1095, %v1287
        %v1289 = vpop.f32.mrb[0].mxu0
        %v1290 = vadd.f32 %v1097, %v1289
        %1291 = vmatprep.mubr.bf16.mxu0 0
        %1292 = vmatmul.mubr.bf16.gmra.mrb[0].mxu0 %v704
        %v1293 = vpop.f32.mrb[0].mxu0
        %v1294 = vadd.f32 %v1101, %v1293
        %v1295 = vpop.f32.mrb[0].mxu0
        %v1296 = vadd.f32 %v1103, %v1295
        %v1297 = vpop.f32.mrb[0].mxu0
        %v1298 = vadd.f32 %v1105, %v1297
        %v1299 = vpop.f32.mrb[0].mxu0
        %v1300 = vadd.f32 %v1107, %v1299
        %1301 = vmatprep.mubr.bf16.mxu0 0
        %1302 = vmatmul.mubr.bf16.gmra.mrb[0].mxu0 %v707
        %v1303 = vpop.f32.mrb[0].mxu0
        %v1304 = vadd.f32 %v1111, %v1303
        %v1305 = vpop.f32.mrb[0].mxu0
        %v1306 = vadd.f32 %v1113, %v1305
        %v1307 = vpop.f32.mrb[0].mxu0
        %v1308 = vadd.f32 %v1115, %v1307
        %v1309 = vpop.f32.mrb[0].mxu0
        %v1310 = vadd.f32 %v1117, %v1309
        %1311 = vmatprep.mubr.bf16.mxu0 0
        %1312 = vmatmul.mubr.bf16.gmra.mrb[0].mxu0 %v710
        %v1313 = vpop.f32.mrb[0].mxu0
        %v1314 = vadd.f32 %v1121, %v1313
        %v1315 = vpop.f32.mrb[0].mxu0
        %v1316 = vadd.f32 %v1123, %v1315
        %v1317 = vpop.f32.mrb[0].mxu0
        %v1318 = vadd.f32 %v1125, %v1317
        %v1319 = vpop.f32.mrb[0].mxu0
        %v1320 = vadd.f32 %v1127, %v1319
        %1321 = vmatprep.mubr.bf16.mxu0 0
        %1322 = vmatmul.mubr.bf16.gmra.mrb[0].mxu0 %v713
        %v1323 = vpop.f32.mrb[0].mxu0
        %v1324 = vadd.f32 %v1131, %v1323
        %v1325 = vpop.f32.mrb[0].mxu0
        %v1326 = vadd.f32 %v1133, %v1325
        %v1327 = vpop.f32.mrb[0].mxu0
        %v1328 = vadd.f32 %v1135, %v1327
        %v1329 = vpop.f32.mrb[0].mxu0
        %v1330 = vadd.f32 %v1137, %v1329
        %1331 = vmatprep.mubr.bf16.mxu0 0
        %1332 = vmatmul.mubr.bf16.gmra.mrb[0].mxu0 %v716
        %v1333 = vpop.f32.mrb[0].mxu0
        %v1334 = vadd.f32 %v1141, %v1333
        %v1335 = vpop.f32.mrb[0].mxu0
        %v1336 = vadd.f32 %v1143, %v1335
        %v1337 = vpop.f32.mrb[0].mxu0
        %v1338 = vadd.f32 %v1145, %v1337
        %v1339 = vpop.f32.mrb[0].mxu0
        %v1340 = vadd.f32 %v1147, %v1339
        %1341 = vmatprep.mubr.bf16.mxu0 0
        %1342 = vmatmul.mubr.bf16.gmra.mrb[0].mxu0 %v719
        %v1343 = vpop.f32.mrb[0].mxu0
        %v1344 = vadd.f32 %v1151, %v1343
        %v1345 = vpop.f32.mrb[0].mxu0
        %v1346 = vadd.f32 %v1153, %v1345
        %v1347 = vpop.f32.mrb[0].mxu0
        %v1348 = vadd.f32 %v1155, %v1347
        %v1349 = vpop.f32.mrb[0].mxu0
        %v1350 = vadd.f32 %v1157, %v1349
        %1351 = vmatprep.mubr.bf16.mxu0 0
        %1352 = vmatmul.mubr.bf16.gmra.mrb[0].mxu0 %v722
        %v1353 = vpop.f32.mrb[0].mxu0
        %v1354 = vadd.f32 %v1161, %v1353
        %v1355 = vpop.f32.mrb[0].mxu0
        %v1356 = vadd.f32 %v1163, %v1355
        %v1357 = vpop.f32.mrb[0].mxu0
        %v1358 = vadd.f32 %v1165, %v1357
        %v1359 = vpop.f32.mrb[0].mxu0
        %v1360 = vadd.f32 %v1167, %v1359
        %1361 = vmatprep.mubr.bf16.mxu0 0
        %1362 = vmatmul.mubr.bf16.gmra.mrb[0].mxu0 %v725
        %v1363 = vpop.f32.mrb[0].mxu0
        %v1364 = vadd.f32 %v1171, %v1363
        %v1365 = vpop.f32.mrb[0].mxu0
        %v1366 = vadd.f32 %v1173, %v1365
        %v1367 = vpop.f32.mrb[0].mxu0
        %v1368 = vadd.f32 %v1175, %v1367
        %v1369 = vpop.f32.mrb[0].mxu0
        %v1370 = vadd.f32 %v1177, %v1369
        %1371 = vmatprep.mubr.bf16.mxu0 0
        %1372 = vmatmul.mubr.bf16.gmra.mrb[0].mxu0 %v728
        %v1373 = vpop.f32.mrb[0].mxu0
        %v1374 = vadd.f32 %v1181, %v1373
        %v1375 = vpop.f32.mrb[0].mxu0
        %v1376 = vadd.f32 %v1183, %v1375
        %v1377 = vpop.f32.mrb[0].mxu0
        %v1378 = vadd.f32 %v1185, %v1377
        %v1379 = vpop.f32.mrb[0].mxu0
        %v1380 = vadd.f32 %v1187, %v1379
        %1381 = vmatprep.mubr.bf16.mxu0 0
        %1382 = vmatmul.mubr.bf16.gmra.mrb[0].mxu0 %v731
        %v1383 = vpop.f32.mrb[0].mxu0
        %v1384 = vadd.f32 %v1191, %v1383
        %v1385 = vpop.f32.mrb[0].mxu0
        %v1386 = vadd.f32 %v1193, %v1385
        %v1387 = vpop.f32.mrb[0].mxu0
        %v1388 = vadd.f32 %v1195, %v1387
        %v1389 = vpop.f32.mrb[0].mxu0
        %v1390 = vadd.f32 %v1197, %v1389
        %1391 = vmatprep.mubr.bf16.mxu0 0
        %1392 = vmatmul.mubr.bf16.gmra.mrb[0].mxu0 %v734
        %v1393 = vpop.f32.mrb[0].mxu0
        %v1394 = vadd.f32 %v1201, %v1393
        %v1395 = vpop.f32.mrb[0].mxu0
        %v1396 = vadd.f32 %v1203, %v1395
        %v1397 = vpop.f32.mrb[0].mxu0
        %v1398 = vadd.f32 %v1205, %v1397
        %v1399 = vpop.f32.mrb[0].mxu0
        %v1400 = vadd.f32 %v1207, %v1399
        %1401 = vmatprep.mubr.bf16.mxu0 0
        %1402 = vmatmul.mubr.bf16.gmra.mrb[0].mxu0 %v737
        %v1403 = vpop.f32.mrb[0].mxu0
        %v1404 = vadd.f32 %v1211, %v1403
        %v1405 = vpop.f32.mrb[0].mxu0
        %v1406 = vadd.f32 %v1213, %v1405
        %v1407 = vpop.f32.mrb[0].mxu0
        %v1408 = vadd.f32 %v1215, %v1407
        %v1409 = vpop.f32.mrb[0].mxu0
        %v1410 = vadd.f32 %v1217, %v1409
        %1411 = vdwg.mxu0
        %v1412 = vadd.f32 %v354, %v1254
        %v1413 = vadd.f32 %v355, %v1256
        %v1414 = vadd.f32 %v356, %v1258
        %v1415 = vadd.f32 %v357, %v1260
        %v1416 = vadd.f32 %v358, %v1264
        %v1417 = vadd.f32 %v359, %v1266
        %v1418 = vadd.f32 %v360, %v1268
        %v1419 = vadd.f32 %v361, %v1270
        %v1420 = vadd.f32 %v362, %v1274
        %v1421 = vadd.f32 %v363, %v1276
        %v1422 = vadd.f32 %v364, %v1278
        %v1423 = vadd.f32 %v365, %v1280
        %v1424 = vadd.f32 %v366, %v1284
        %v1425 = vadd.f32 %v367, %v1286
        %v1426 = vadd.f32 %v368, %v1288
        %v1427 = vadd.f32 %v369, %v1290
        %v1428 = vadd.f32 %v370, %v1294
        %v1429 = vadd.f32 %v371, %v1296
        %v1430 = vadd.f32 %v372, %v1298
        %v1431 = vadd.f32 %v373, %v1300
        %v1432 = vadd.f32 %v374, %v1304
        %v1433 = vadd.f32 %v375, %v1306
        %v1434 = vadd.f32 %v376, %v1308
        %v1435 = vadd.f32 %v377, %v1310
        %v1436 = vadd.f32 %v378, %v1314
        %v1437 = vadd.f32 %v379, %v1316
        %v1438 = vadd.f32 %v380, %v1318
        %v1439 = vadd.f32 %v381, %v1320
        %v1440 = vadd.f32 %v382, %v1324
        %v1441 = vadd.f32 %v383, %v1326
        %v1442 = vadd.f32 %v384, %v1328
        %v1443 = vadd.f32 %v385, %v1330
        %v1444 = vadd.f32 %v386, %v1334
        %v1445 = vadd.f32 %v387, %v1336
        %v1446 = vadd.f32 %v388, %v1338
        %v1447 = vadd.f32 %v389, %v1340
        %v1448 = vadd.f32 %v390, %v1344
        %v1449 = vadd.f32 %v391, %v1346
        %v1450 = vadd.f32 %v392, %v1348
        %v1451 = vadd.f32 %v393, %v1350
        %v1452 = vadd.f32 %v394, %v1354
        %v1453 = vadd.f32 %v395, %v1356
        %v1454 = vadd.f32 %v396, %v1358
        %v1455 = vadd.f32 %v397, %v1360
        %v1456 = vadd.f32 %v398, %v1364
        %v1457 = vadd.f32 %v399, %v1366
        %v1458 = vadd.f32 %v400, %v1368
        %v1459 = vadd.f32 %v401, %v1370
        %v1460 = vadd.f32 %v402, %v1374
        %v1461 = vadd.f32 %v403, %v1376
        %v1462 = vadd.f32 %v404, %v1378
        %v1463 = vadd.f32 %v405, %v1380
        %v1464 = vadd.f32 %v406, %v1384
        %v1465 = vadd.f32 %v407, %v1386
        %v1466 = vadd.f32 %v408, %v1388
        %v1467 = vadd.f32 %v409, %v1390
        %v1468 = vadd.f32 %v410, %v1394
        %v1469 = vadd.f32 %v411, %v1396
        %v1470 = vadd.f32 %v412, %v1398
        %v1471 = vadd.f32 %v413, %v1400
        %v1472 = vadd.f32 %v414, %v1404
        %v1473 = vadd.f32 %v415, %v1406
        %v1474 = vadd.f32 %v416, %v1408
        %v1475 = vadd.f32 %v417, %v1410
        %1476 = vst [vmem:[#allocation2] sm:$0xff] %v1412
        %1477 = vst [vmem:[#allocation2 + $0x8] sm:$0xff] %v1413
        %1478 = vst [vmem:[#allocation2 + $0x10] sm:$0xff] %v1414
        %1479 = vst [vmem:[#allocation2 + $0x18] sm:$0xff] %v1415
        %1480 = vst [vmem:[#allocation2 + $0x20] sm:$0xff] %v1416
        %1481 = vst [vmem:[#allocation2 + $0x28] sm:$0xff] %v1417
        %1482 = vst [vmem:[#allocation2 + $0x30] sm:$0xff] %v1418
        %1483 = vst [vmem:[#allocation2 + $0x38] sm:$0xff] %v1419
        %1484 = vst [vmem:[#allocation2 + $0x40] sm:$0xff] %v1420
        %1485 = vst [vmem:[#allocation2 + $0x48] sm:$0xff] %v1421
        %1486 = vst [vmem:[#allocation2 + $0x50] sm:$0xff] %v1422
        %1487 = vst [vmem:[#allocation2 + $0x58] sm:$0xff] %v1423
        %1488 = vst [vmem:[#allocation2 + $0x60] sm:$0xff] %v1424
        %1489 = vst [vmem:[#allocation2 + $0x68] sm:$0xff] %v1425
        %1490 = vst [vmem:[#allocation2 + $0x70] sm:$0xff] %v1426
        %1491 = vst [vmem:[#allocation2 + $0x78] sm:$0xff] %v1427
        %1492 = vst [vmem:[#allocation2 + $0x80] sm:$0xff] %v1428
        %1493 = vst [vmem:[#allocation2 + $0x88] sm:$0xff] %v1429
        %1494 = vst [vmem:[#allocation2 + $0x90] sm:$0xff] %v1430
        %1495 = vst [vmem:[#allocation2 + $0x98] sm:$0xff] %v1431
        %1496 = vst [vmem:[#allocation2 + $0xa0] sm:$0xff] %v1432
        %1497 = vst [vmem:[#allocation2 + $0xa8] sm:$0xff] %v1433
        %1498 = vst [vmem:[#allocation2 + $0xb0] sm:$0xff] %v1434
        %1499 = vst [vmem:[#allocation2 + $0xb8] sm:$0xff] %v1435
        %1500 = vst [vmem:[#allocation2 + $0xc0] sm:$0xff] %v1436
        %1501 = vst [vmem:[#allocation2 + $0xc8] sm:$0xff] %v1437
        %1502 = vst [vmem:[#allocation2 + $0xd0] sm:$0xff] %v1438
        %1503 = vst [vmem:[#allocation2 + $0xd8] sm:$0xff] %v1439
        %1504 = vst [vmem:[#allocation2 + $0xe0] sm:$0xff] %v1440
        %1505 = vst [vmem:[#allocation2 + $0xe8] sm:$0xff] %v1441
        %1506 = vst [vmem:[#allocation2 + $0xf0] sm:$0xff] %v1442
        %1507 = vst [vmem:[#allocation2 + $0xf8] sm:$0xff] %v1443
        %1508 = vst [vmem:[#allocation2 + $0x100] sm:$0xff] %v1444
        %1509 = vst [vmem:[#allocation2 + $0x108] sm:$0xff] %v1445
        %1510 = vst [vmem:[#allocation2 + $0x110] sm:$0xff] %v1446
        %1511 = vst [vmem:[#allocation2 + $0x118] sm:$0xff] %v1447
        %1512 = vst [vmem:[#allocation2 + $0x120] sm:$0xff] %v1448
        %1513 = vst [vmem:[#allocation2 + $0x128] sm:$0xff] %v1449
        %1514 = vst [vmem:[#allocation2 + $0x130] sm:$0xff] %v1450
        %1515 = vst [vmem:[#allocation2 + $0x138] sm:$0xff] %v1451
        %1516 = vst [vmem:[#allocation2 + $0x140] sm:$0xff] %v1452
        %1517 = vst [vmem:[#allocation2 + $0x148] sm:$0xff] %v1453
        %1518 = vst [vmem:[#allocation2 + $0x150] sm:$0xff] %v1454
        %1519 = vst [vmem:[#allocation2 + $0x158] sm:$0xff] %v1455
        %1520 = vst [vmem:[#allocation2 + $0x160] sm:$0xff] %v1456
        %1521 = vst [vmem:[#allocation2 + $0x168] sm:$0xff] %v1457
        %1522 = vst [vmem:[#allocation2 + $0x170] sm:$0xff] %v1458
        %1523 = vst [vmem:[#allocation2 + $0x178] sm:$0xff] %v1459
        %1524 = vst [vmem:[#allocation2 + $0x180] sm:$0xff] %v1460
        %1525 = vst [vmem:[#allocation2 + $0x188] sm:$0xff] %v1461
        %1526 = vst [vmem:[#allocation2 + $0x190] sm:$0xff] %v1462
        %1527 = vst [vmem:[#allocation2 + $0x198] sm:$0xff] %v1463
        %1528 = vst [vmem:[#allocation2 + $0x1a0] sm:$0xff] %v1464
        %1529 = vst [vmem:[#allocation2 + $0x1a8] sm:$0xff] %v1465
        %1530 = vst [vmem:[#allocation2 + $0x1b0] sm:$0xff] %v1466
        %1531 = vst [vmem:[#allocation2 + $0x1b8] sm:$0xff] %v1467
        %1532 = vst [vmem:[#allocation2 + $0x1c0] sm:$0xff] %v1468
        %1533 = vst [vmem:[#allocation2 + $0x1c8] sm:$0xff] %v1469
        %1534 = vst [vmem:[#allocation2 + $0x1d0] sm:$0xff] %v1470
        %1535 = vst [vmem:[#allocation2 + $0x1d8] sm:$0xff] %v1471
        %1536 = vst [vmem:[#allocation2 + $0x1e0] sm:$0xff] %v1472
        %1537 = vst [vmem:[#allocation2 + $0x1e8] sm:$0xff] %v1473
        %1538 = vst [vmem:[#allocation2 + $0x1f0] sm:$0xff] %v1474
        %1539 = vst [vmem:[#allocation2 + $0x1f8] sm:$0xff] %v1475
        // Predicated region
        $region45: #{tpu_custom_call.1} parent=31 // pred_check
          %p1540 = pneg %p286
        $region46: #{tpu_custom_call.1} parent=31 // pred_check_branch
          %1542 = sbr.rel (%p1540) target = $region48
        $region47: #{tpu_custom_call.1} parent=31 // pred_region
          %v1543 = vld [vmem:[#allocation2] sm:$0xff]
          %v1544 = vld [vmem:[#allocation2 + $0x8] sm:$0xff]
          %v1545 = vld [vmem:[#allocation2 + $0x10] sm:$0xff]
          %v1546 = vld [vmem:[#allocation2 + $0x18] sm:$0xff]
          %v1547 = vld [vmem:[#allocation2 + $0x20] sm:$0xff]
          %v1548 = vld [vmem:[#allocation2 + $0x28] sm:$0xff]
          %v1549 = vld [vmem:[#allocation2 + $0x30] sm:$0xff]
          %v1550 = vld [vmem:[#allocation2 + $0x38] sm:$0xff]
          %v1551 = vld [vmem:[#allocation2 + $0x40] sm:$0xff]
          %v1552 = vld [vmem:[#allocation2 + $0x48] sm:$0xff]
          %v1553 = vld [vmem:[#allocation2 + $0x50] sm:$0xff]
          %v1554 = vld [vmem:[#allocation2 + $0x58] sm:$0xff]
          %v1555 = vld [vmem:[#allocation2 + $0x60] sm:$0xff]
          %v1556 = vld [vmem:[#allocation2 + $0x68] sm:$0xff]
          %v1557 = vld [vmem:[#allocation2 + $0x70] sm:$0xff]
          %v1558 = vld [vmem:[#allocation2 + $0x78] sm:$0xff]
          %v1559 = vld [vmem:[#allocation2 + $0x80] sm:$0xff]
          %v1560 = vld [vmem:[#allocation2 + $0x88] sm:$0xff]
          %v1561 = vld [vmem:[#allocation2 + $0x90] sm:$0xff]
          %v1562 = vld [vmem:[#allocation2 + $0x98] sm:$0xff]
          %v1563 = vld [vmem:[#allocation2 + $0xa0] sm:$0xff]
          %v1564 = vld [vmem:[#allocation2 + $0xa8] sm:$0xff]
          %v1565 = vld [vmem:[#allocation2 + $0xb0] sm:$0xff]
          %v1566 = vld [vmem:[#allocation2 + $0xb8] sm:$0xff]
          %v1567 = vld [vmem:[#allocation2 + $0xc0] sm:$0xff]
          %v1568 = vld [vmem:[#allocation2 + $0xc8] sm:$0xff]
          %v1569 = vld [vmem:[#allocation2 + $0xd0] sm:$0xff]
          %v1570 = vld [vmem:[#allocation2 + $0xd8] sm:$0xff]
          %v1571 = vld [vmem:[#allocation2 + $0xe0] sm:$0xff]
          %v1572 = vld [vmem:[#allocation2 + $0xe8] sm:$0xff]
          %v1573 = vld [vmem:[#allocation2 + $0xf0] sm:$0xff]
          %v1574 = vld [vmem:[#allocation2 + $0xf8] sm:$0xff]
          %v1575 = vld [vmem:[#allocation2 + $0x100] sm:$0xff]
          %v1576 = vld [vmem:[#allocation2 + $0x108] sm:$0xff]
          %v1577 = vld [vmem:[#allocation2 + $0x110] sm:$0xff]
          %v1578 = vld [vmem:[#allocation2 + $0x118] sm:$0xff]
          %v1579 = vld [vmem:[#allocation2 + $0x120] sm:$0xff]
          %v1580 = vld [vmem:[#allocation2 + $0x128] sm:$0xff]
          %v1581 = vld [vmem:[#allocation2 + $0x130] sm:$0xff]
          %v1582 = vld [vmem:[#allocation2 + $0x138] sm:$0xff]
          %v1583 = vld [vmem:[#allocation2 + $0x140] sm:$0xff]
          %v1584 = vld [vmem:[#allocation2 + $0x148] sm:$0xff]
          %v1585 = vld [vmem:[#allocation2 + $0x150] sm:$0xff]
          %v1586 = vld [vmem:[#allocation2 + $0x158] sm:$0xff]
          %v1587 = vld [vmem:[#allocation2 + $0x160] sm:$0xff]
          %v1588 = vld [vmem:[#allocation2 + $0x168] sm:$0xff]
          %v1589 = vld [vmem:[#allocation2 + $0x170] sm:$0xff]
          %v1590 = vld [vmem:[#allocation2 + $0x178] sm:$0xff]
          %v1591 = vld [vmem:[#allocation2 + $0x180] sm:$0xff]
          %v1592 = vld [vmem:[#allocation2 + $0x188] sm:$0xff]
          %v1593 = vld [vmem:[#allocation2 + $0x190] sm:$0xff]
          %v1594 = vld [vmem:[#allocation2 + $0x198] sm:$0xff]
          %v1595 = vld [vmem:[#allocation2 + $0x1a0] sm:$0xff]
          %v1596 = vld [vmem:[#allocation2 + $0x1a8] sm:$0xff]
          %v1597 = vld [vmem:[#allocation2 + $0x1b0] sm:$0xff]
          %v1598 = vld [vmem:[#allocation2 + $0x1b8] sm:$0xff]
          %v1599 = vld [vmem:[#allocation2 + $0x1c0] sm:$0xff]
          %v1600 = vld [vmem:[#allocation2 + $0x1c8] sm:$0xff]
          %v1601 = vld [vmem:[#allocation2 + $0x1d0] sm:$0xff]
          %v1602 = vld [vmem:[#allocation2 + $0x1d8] sm:$0xff]
          %v1603 = vld [vmem:[#allocation2 + $0x1e0] sm:$0xff]
          %v1604 = vld [vmem:[#allocation2 + $0x1e8] sm:$0xff]
          %v1605 = vld [vmem:[#allocation2 + $0x1f0] sm:$0xff]
          %v1606 = vld [vmem:[#allocation2 + $0x1f8] sm:$0xff]
          %v1607 = vld [vmem:[%s276] sm:$0x3]
          %v1609 = vlaneseq
          %v1610 = vshrl.u32 %v1609, 7
          %v1611 = vsub.s32 0, %v1610
          %v1612 = vrot.slane %v1607, %v1611
          %v1613 = vlaneseq
          %v1614 = vshrl.u32 %v1613, 7
          %v1615 = vsub.s32 1, %v1614
          %v1616 = vrot.slane %v1607, %v1615
          %v1619 = vadd.f32 %v1543, %v1612
          %v1620 = vadd.f32 %v1544, %v1616
          %v1621 = vadd.f32 %v1545, %v1612
          %v1622 = vadd.f32 %v1546, %v1616
          %v1623 = vadd.f32 %v1547, %v1612
          %v1624 = vadd.f32 %v1548, %v1616
          %v1625 = vadd.f32 %v1549, %v1612
          %v1626 = vadd.f32 %v1550, %v1616
          %v1627 = vadd.f32 %v1551, %v1612
          %v1628 = vadd.f32 %v1552, %v1616
          %v1629 = vadd.f32 %v1553, %v1612
          %v1630 = vadd.f32 %v1554, %v1616
          %v1631 = vadd.f32 %v1555, %v1612
          %v1632 = vadd.f32 %v1556, %v1616
          %v1633 = vadd.f32 %v1557, %v1612
          %v1634 = vadd.f32 %v1558, %v1616
          %v1635 = vadd.f32 %v1559, %v1612
          %v1636 = vadd.f32 %v1560, %v1616
          %v1637 = vadd.f32 %v1561, %v1612
          %v1638 = vadd.f32 %v1562, %v1616
          %v1639 = vadd.f32 %v1563, %v1612
          %v1640 = vadd.f32 %v1564, %v1616
          %v1641 = vadd.f32 %v1565, %v1612
          %v1642 = vadd.f32 %v1566, %v1616
          %v1643 = vadd.f32 %v1567, %v1612
          %v1644 = vadd.f32 %v1568, %v1616
          %v1645 = vadd.f32 %v1569, %v1612
          %v1646 = vadd.f32 %v1570, %v1616
          %v1647 = vadd.f32 %v1571, %v1612
          %v1648 = vadd.f32 %v1572, %v1616
          %v1649 = vadd.f32 %v1573, %v1612
          %v1650 = vadd.f32 %v1574, %v1616
          %v1651 = vadd.f32 %v1575, %v1612
          %v1652 = vadd.f32 %v1576, %v1616
          %v1653 = vadd.f32 %v1577, %v1612
          %v1654 = vadd.f32 %v1578, %v1616
          %v1655 = vadd.f32 %v1579, %v1612
          %v1656 = vadd.f32 %v1580, %v1616
          %v1657 = vadd.f32 %v1581, %v1612
          %v1658 = vadd.f32 %v1582, %v1616
          %v1659 = vadd.f32 %v1583, %v1612
          %v1660 = vadd.f32 %v1584, %v1616
          %v1661 = vadd.f32 %v1585, %v1612
          %v1662 = vadd.f32 %v1586, %v1616
          %v1663 = vadd.f32 %v1587, %v1612
          %v1664 = vadd.f32 %v1588, %v1616
          %v1665 = vadd.f32 %v1589, %v1612
          %v1666 = vadd.f32 %v1590, %v1616
          %v1667 = vadd.f32 %v1591, %v1612
          %v1668 = vadd.f32 %v1592, %v1616
          %v1669 = vadd.f32 %v1593, %v1612
          %v1670 = vadd.f32 %v1594, %v1616
          %v1671 = vadd.f32 %v1595, %v1612
          %v1672 = vadd.f32 %v1596, %v1616
          %v1673 = vadd.f32 %v1597, %v1612
          %v1674 = vadd.f32 %v1598, %v1616
          %v1675 = vadd.f32 %v1599, %v1612
          %v1676 = vadd.f32 %v1600, %v1616
          %v1677 = vadd.f32 %v1601, %v1612
          %v1678 = vadd.f32 %v1602, %v1616
          %v1679 = vadd.f32 %v1603, %v1612
          %v1680 = vadd.f32 %v1604, %v1616
          %v1681 = vadd.f32 %v1605, %v1612
          %v1682 = vadd.f32 %v1606, %v1616
          %1683 = vst [vmem:[%s263] sm:$0xff] %v1619
          %1684 = vst [vmem:[%s263 + $0x8] sm:$0xff] %v1620
          %1685 = vst [vmem:[%s263 + $0x10] sm:$0xff] %v1621
          %1686 = vst [vmem:[%s263 + $0x18] sm:$0xff] %v1622
          %1687 = vst [vmem:[%s263 + $0x20] sm:$0xff] %v1623
          %1688 = vst [vmem:[%s263 + $0x28] sm:$0xff] %v1624
          %1689 = vst [vmem:[%s263 + $0x30] sm:$0xff] %v1625
          %1690 = vst [vmem:[%s263 + $0x38] sm:$0xff] %v1626
          %1691 = vst [vmem:[%s263 + $0x40] sm:$0xff] %v1627
          %1692 = vst [vmem:[%s263 + $0x48] sm:$0xff] %v1628
          %1693 = vst [vmem:[%s263 + $0x50] sm:$0xff] %v1629
          %1694 = vst [vmem:[%s263 + $0x58] sm:$0xff] %v1630
          %1695 = vst [vmem:[%s263 + $0x60] sm:$0xff] %v1631
          %1696 = vst [vmem:[%s263 + $0x68] sm:$0xff] %v1632
          %1697 = vst [vmem:[%s263 + $0x70] sm:$0xff] %v1633
          %1698 = vst [vmem:[%s263 + $0x78] sm:$0xff] %v1634
          %1699 = vst [vmem:[%s263 + $0x80] sm:$0xff] %v1635
          %1700 = vst [vmem:[%s263 + $0x88] sm:$0xff] %v1636
          %1701 = vst [vmem:[%s263 + $0x90] sm:$0xff] %v1637
          %1702 = vst [vmem:[%s263 + $0x98] sm:$0xff] %v1638
          %1703 = vst [vmem:[%s263 + $0xa0] sm:$0xff] %v1639
          %1704 = vst [vmem:[%s263 + $0xa8] sm:$0xff] %v1640
          %1705 = vst [vmem:[%s263 + $0xb0] sm:$0xff] %v1641
          %1706 = vst [vmem:[%s263 + $0xb8] sm:$0xff] %v1642
          %1707 = vst [vmem:[%s263 + $0xc0] sm:$0xff] %v1643
          %1708 = vst [vmem:[%s263 + $0xc8] sm:$0xff] %v1644
          %1709 = vst [vmem:[%s263 + $0xd0] sm:$0xff] %v1645
          %1710 = vst [vmem:[%s263 + $0xd8] sm:$0xff] %v1646
          %1711 = vst [vmem:[%s263 + $0xe0] sm:$0xff] %v1647
          %1712 = vst [vmem:[%s263 + $0xe8] sm:$0xff] %v1648
          %1713 = vst [vmem:[%s263 + $0xf0] sm:$0xff] %v1649
          %1714 = vst [vmem:[%s263 + $0xf8] sm:$0xff] %v1650
          %1715 = vst [vmem:[%s263 + $0x100] sm:$0xff] %v1651
          %1716 = vst [vmem:[%s263 + $0x108] sm:$0xff] %v1652
          %1717 = vst [vmem:[%s263 + $0x110] sm:$0xff] %v1653
          %1718 = vst [vmem:[%s263 + $0x118] sm:$0xff] %v1654
          %1719 = vst [vmem:[%s263 + $0x120] sm:$0xff] %v1655
          %1720 = vst [vmem:[%s263 + $0x128] sm:$0xff] %v1656
          %1721 = vst [vmem:[%s263 + $0x130] sm:$0xff] %v1657
          %1722 = vst [vmem:[%s263 + $0x138] sm:$0xff] %v1658
          %1723 = vst [vmem:[%s263 + $0x140] sm:$0xff] %v1659
          %1724 = vst [vmem:[%s263 + $0x148] sm:$0xff] %v1660
          %1725 = vst [vmem:[%s263 + $0x150] sm:$0xff] %v1661
          %1726 = vst [vmem:[%s263 + $0x158] sm:$0xff] %v1662
          %1727 = vst [vmem:[%s263 + $0x160] sm:$0xff] %v1663
          %1728 = vst [vmem:[%s263 + $0x168] sm:$0xff] %v1664
          %1729 = vst [vmem:[%s263 + $0x170] sm:$0xff] %v1665
          %1730 = vst [vmem:[%s263 + $0x178] sm:$0xff] %v1666
          %1731 = vst [vmem:[%s263 + $0x180] sm:$0xff] %v1667
          %1732 = vst [vmem:[%s263 + $0x188] sm:$0xff] %v1668
          %1733 = vst [vmem:[%s263 + $0x190] sm:$0xff] %v1669
          %1734 = vst [vmem:[%s263 + $0x198] sm:$0xff] %v1670
          %1735 = vst [vmem:[%s263 + $0x1a0] sm:$0xff] %v1671
          %1736 = vst [vmem:[%s263 + $0x1a8] sm:$0xff] %v1672
          %1737 = vst [vmem:[%s263 + $0x1b0] sm:$0xff] %v1673
          %1738 = vst [vmem:[%s263 + $0x1b8] sm:$0xff] %v1674
          %1739 = vst [vmem:[%s263 + $0x1c0] sm:$0xff] %v1675
          %1740 = vst [vmem:[%s263 + $0x1c8] sm:$0xff] %v1676
          %1741 = vst [vmem:[%s263 + $0x1d0] sm:$0xff] %v1677
          %1742 = vst [vmem:[%s263 + $0x1d8] sm:$0xff] %v1678
          %1743 = vst [vmem:[%s263 + $0x1e0] sm:$0xff] %v1679
          %1744 = vst [vmem:[%s263 + $0x1e8] sm:$0xff] %v1680
          %1745 = vst [vmem:[%s263 + $0x1f0] sm:$0xff] %v1681
          %1746 = vst [vmem:[%s263 + $0x1f8] sm:$0xff] %v1682
        $region48: #{tpu_custom_call.1} parent=31 // pred_fallthru
          _
        %s1747 = sand.u32 %s132, 1
        %s1748 = scalar_lea.sflag [#allocation5], %s1747
        %s1749 = sand.u32 %s132, 1
        %s1750 = smul.addr %s1749, 512
        %s1751 = scalar_lea.vmem [#allocation8], %s1750
        // Predicated region
        $region49: #{tpu_custom_call.1} parent=31 // pred_check
          %p1752 = pneg %p142
        $region50: #{tpu_custom_call.1} parent=31 // pred_check_branch
          %1754 = sbr.rel (%p1752) target = $region52
        $region51: #{tpu_custom_call.1} parent=31 // pred_region
          %s1755 = smul.u32 32, %s26
          %s1756 = smul.u32 2, %s27
          %s1757 = ssub.s32 44, %s1755
          %p1758 = scmp.lt.s32.totalorder %s1757, 32
          %s1759 = scalar_select %p1758, %s1757, 32
          %s1760 = smul.u32 128, %s1759
          %s1761 = smul.u32 %s1760, 2
          %s1763 = ssub.s32 8192, %s1761
          %1764 = vsyncadd %s1748, %s1763
          %p1765 = scmp.ne.s32.totalorder 0, %s1761
          %s1766 = smul.addr %s1755, 2
          %s1767 = sadd.s32 %s1756, %s1766
          %s1768 = smul.addr %s1767, 128
          %s1769 = scalar_lea.hbm %s3, %s1768
          %s1770 = smul.u32 16, %s1759
          %s1771 = sshll.u32 %s1751, 4
          %s1772 = int_to_ptr.vmem [resolvable:$true] %s1771
          %s1773 = sshll.u32 %s1770, 4
          %1777 = dma.vmem_to_hbm [thread:$0]  (%p1765), %s1772, %s1773, %s1769, %s1748, 256, 256, 16
        $region52: #{tpu_custom_call.1} parent=31 // pred_fallthru
          _
      $region32: #{tpu_custom_call.1} parent=5 // pred_fallthru
        _
      %p1778 = scmp.le.s32.totalorder 2, %s16
      // Predicated region
      $region53: #{tpu_custom_call.1} parent=5 // pred_check
        %p1779 = pneg %p1778
      $region54: #{tpu_custom_call.1} parent=5 // pred_check_branch
        %1781 = sbr.rel (%p1779) target = $region56
      $region55: #{tpu_custom_call.1} parent=5 // pred_region
        %s1782 = ssub.s32 %s16, 2
        // Predicated region
        $region57: #{tpu_custom_call.1} parent=55 // pred_check
          %p1783 = pneg %p148
        $region58: #{tpu_custom_call.1} parent=55 // pred_check_branch
          %1785 = sbr.rel (%p1783) target = $region60
        $region59: #{tpu_custom_call.1} parent=55 // pred_region
          %s1786 = sand.u32 %s133, 1
          %s1787 = scalar_lea.sflag [#allocation5], %s1786
          %s1788 = sand.u32 %s133, 1
          %s1789 = smul.addr %s1788, 512
          %s1790 = scalar_lea.vmem [#allocation8], %s1789
          %1791 = dma.done %s1787, 8192
        $region60: #{tpu_custom_call.1} parent=55 // pred_fallthru
          _
      $region56: #{tpu_custom_call.1} parent=5 // pred_fallthru
        _
    $region6: #{tpu_custom_call.1} parent=1 // loop_footer
      %s20 = sadd.s32 1, %s16
    $region7: #{tpu_custom_call.1} parent=1 // loop_footer_branch
      %15 = sbr.rel target = $region3
    $region8: #{tpu_custom_call.1} parent=1 // loop_exit
      _
    %1792 = vsyncpa [#allocation4], 1
    %s1793 = scalar_lea.sflag [#allocation4], 1
    %1794 = vsyncpa %s1793, 1
    %1795 = vsyncpa [#allocation7], 1
    %1796 = vsyncpa [#allocation5], 1
    %s1797 = scalar_lea.sflag [#allocation5], 1
    %1798 = vsyncpa %s1797, 1

</llo_original>
